<compile_context>
chip_gen: v7x
topology: tpu7x:2x2x1
jax: 0.10.0
libtpu: 0.0.40
codegen_flags: <defaults>
</compile_context>

<pallas_src>
from functools import partial

import jax
import jax.numpy as jnp
from jax.experimental import pallas as pl
from jax.experimental.pallas import tpu as pltpu

_VMEM_LIMIT = 48 * 1024 * 1024   # safe on v5e (128 MiB), v6e (128 MiB), v7x (64 MiB)
_LN_EPS = 1e-5                   # nn.TransformerEncoderLayer default layer_norm_eps


def _pick_tile_m(M):
    """Largest row tile <= 512 that divides M (whole array for odd small M)."""
    for t in (512, 256, 128, 64, 32, 16, 8):
        if M % t == 0:
            return t
    return M


def _mosaic_params(n_grid_axes):
    return pltpu.CompilerParams(
        dimension_semantics=("parallel",) * n_grid_axes,
        vmem_limit_bytes=_VMEM_LIMIT,
    )


# ----------------------------------------------------------------------------
# Kernel 1: row-tiled linear  y = x @ W + b   (bf16 operands, f32 accumulate)
# ----------------------------------------------------------------------------
def _linear_kernel(x_ref, w_ref, b_ref, o_ref):
    x = x_ref[...].astype(jnp.bfloat16)
    y = jnp.dot(x, w_ref[...], preferred_element_type=jnp.float32)
    o_ref[...] = y + b_ref[...]


def linear(x2d, w_bf16, b2d):
    """x2d: (M, K) f32, w_bf16: (K, N) bf16, b2d: (1, N) f32 -> (M, N) f32."""
    M, K = x2d.shape
    N = w_bf16.shape[1]
    tm = _pick_tile_m(M)
    return pl.pallas_call(
        _linear_kernel,
        out_shape=jax.ShapeDtypeStruct((M, N), jnp.float32),
        grid=(M // tm,),
        in_specs=[
            pl.BlockSpec((tm, K), lambda i: (i, 0)),
            pl.BlockSpec((K, N), lambda i: (0, 0)),   # weights stay resident
            pl.BlockSpec((1, N), lambda i: (0, 0)),
        ],
        out_specs=pl.BlockSpec((tm, N), lambda i: (i, 0)),
        compiler_params=_mosaic_params(1),
    )(x2d, w_bf16, b2d)


# ----------------------------------------------------------------------------
# Kernel 2: attention (all heads) + W_o projection + residual + LayerNorm1
# ----------------------------------------------------------------------------
def _attn_ln_kernel(qkv_ref, wo_ref, bo_ref, res_ref, g_ref, beta_ref, o_ref,
                    *, nhead, scale, eps):
    H = nhead
    t = qkv_ref[0]                               # (3H, S, Dh) f32
    q = t[:H].astype(jnp.bfloat16)               # (H, S, Dh)
    k = t[H:2 * H].astype(jnp.bfloat16)
    v = t[2 * H:].astype(jnp.bfloat16)

    # scores + numerically stable softmax (f32)
    s = jnp.einsum('hqd,hkd->hqk', q, k,
                   preferred_element_type=jnp.float32) * scale       # (H, S, S)
    m = jnp.max(s, axis=-1, keepdims=True)
    p = jnp.exp(s - m)
    denom = jnp.sum(p, axis=-1, keepdims=True)
    p = p * pl.reciprocal(denom, approx=True)                         # EUP slot

    ctx = jnp.einsum('hqk,hkd->hqd', p.astype(jnp.bfloat16), v,
                     preferred_element_type=jnp.float32)              # (H, S, Dh)

    # output projection folded in: per-head partial matmuls summed over heads
    proj = jnp.einsum('hqd,hde->hqe', ctx.astype(jnp.bfloat16), wo_ref[...],
                      preferred_element_type=jnp.float32)             # (H, S, D)
    attn = jnp.sum(proj, axis=0) + bo_ref[...]                         # (S, D)

    # residual + LayerNorm (biased variance, matches PyTorch)
    y = attn + res_ref[0]
    mean = jnp.mean(y, axis=-1, keepdims=True)
    var = jnp.mean((y - mean) ** 2, axis=-1, keepdims=True)
    yn = (y - mean) * jax.lax.rsqrt(var + eps)
    o_ref[0] = yn * g_ref[...] + beta_ref[...]


def attention_block(qkv4, wo_h, bo, res3d, gamma, beta, *, nhead, scale, eps=_LN_EPS):
    """qkv4: (B, 3H, S, Dh) f32, wo_h: (H, Dh, D) bf16, res3d: (B, S, D) f32."""
    B, threeH, S, Dh = qkv4.shape
    D = wo_h.shape[-1]
    return pl.pallas_call(
        partial(_attn_ln_kernel, nhead=nhead, scale=scale, eps=eps),
        out_shape=jax.ShapeDtypeStruct((B, S, D), jnp.float32),
        grid=(B,),
        in_specs=[
            pl.BlockSpec((1, threeH, S, Dh), lambda b: (b, 0, 0, 0)),
            pl.BlockSpec((nhead, Dh, D), lambda b: (0, 0, 0)),
            pl.BlockSpec((1, D), lambda b: (0, 0)),
            pl.BlockSpec((1, S, D), lambda b: (b, 0, 0)),
            pl.BlockSpec((1, D), lambda b: (0, 0)),
            pl.BlockSpec((1, D), lambda b: (0, 0)),
        ],
        out_specs=pl.BlockSpec((1, S, D), lambda b: (b, 0, 0)),
        compiler_params=_mosaic_params(1),
    )(qkv4, wo_h, bo, res3d, gamma, beta)


# ----------------------------------------------------------------------------
# Kernel 3: fused FFN (linear1 + ReLU + linear2) + residual + LayerNorm2
#           — the (tm, dim_ff) intermediate never leaves VMEM.
# ----------------------------------------------------------------------------
def _ffn_ln_kernel(x_ref, w1_ref, b1_ref, w2_ref, b2_ref, g_ref, beta_ref, o_ref,
                   *, eps):
    x = x_ref[...]                                                     # (tm, D) f32
    h = jnp.dot(x.astype(jnp.bfloat16), w1_ref[...],
                preferred_element_type=jnp.float32) + b1_ref[...]      # (tm, F)
    h = jnp.maximum(h, 0.0)
    y = jnp.dot(h.astype(jnp.bfloat16), w2_ref[...],
                preferred_element_type=jnp.float32) + b2_ref[...]      # (tm, D)
    y = y + x                                                          # residual
    mean = jnp.mean(y, axis=-1, keepdims=True)
    var = jnp.mean((y - mean) ** 2, axis=-1, keepdims=True)
    yn = (y - mean) * jax.lax.rsqrt(var + eps)
    o_ref[...] = yn * g_ref[...] + beta_ref[...]


def ffn_residual_layernorm(x2d, w1, b1, w2, b2, gamma, beta, eps=_LN_EPS):
    M, D = x2d.shape
    F = w1.shape[1]
    tm = _pick_tile_m(M)
    return pl.pallas_call(
        partial(_ffn_ln_kernel, eps=eps),
        out_shape=jax.ShapeDtypeStruct((M, D), jnp.float32),
        grid=(M // tm,),
        in_specs=[
            pl.BlockSpec((tm, D), lambda i: (i, 0)),
            pl.BlockSpec((D, F), lambda i: (0, 0)),
            pl.BlockSpec((1, F), lambda i: (0, 0)),
            pl.BlockSpec((F, D), lambda i: (0, 0)),
            pl.BlockSpec((1, D), lambda i: (0, 0)),
            pl.BlockSpec((1, D), lambda i: (0, 0)),
            pl.BlockSpec((1, D), lambda i: (0, 0)),
        ],
        out_specs=pl.BlockSpec((tm, D), lambda i: (i, 0)),
        compiler_params=_mosaic_params(1),
    )(x2d, w1, b1, w2, b2, gamma, beta)


# ----------------------------------------------------------------------------
# Kernel 4: mean over sequence + output linear (lane dim padded to 128)
# ----------------------------------------------------------------------------
def _pool_out_kernel(x_ref, w_ref, b_ref, o_ref):
    pooled = jnp.mean(x_ref[...], axis=1)                              # (B, D) f32
    o_ref[...] = (jnp.dot(pooled.astype(jnp.bfloat16), w_ref[...],
                          preferred_element_type=jnp.float32) + b_ref[...])


def pool_output_linear(x3d, w_pad, b_pad):
    """x3d: (B, S, D) f32, w_pad: (D, Np) bf16, b_pad: (1, Np) f32 -> (B, Np)."""
    B, S, D = x3d.shape
    Np = w_pad.shape[1]
    return pl.pallas_call(
        _pool_out_kernel,
        out_shape=jax.ShapeDtypeStruct((B, Np), jnp.float32),
        in_specs=[
            pl.BlockSpec((B, S, D), lambda: (0, 0, 0)),
            pl.BlockSpec((D, Np), lambda: (0, 0)),
            pl.BlockSpec((1, Np), lambda: (0, 0)),
        ],
        out_specs=pl.BlockSpec((B, Np), lambda: (0, 0)),
        compiler_params=pltpu.CompilerParams(vmem_limit_bytes=_VMEM_LIMIT),
    )(x3d, w_pad, b_pad)


# ----------------------------------------------------------------------------
# Parameter init (PyTorch-style) and kernel-friendly prep (fuse QKV, bf16, pad)
# ----------------------------------------------------------------------------
def init_params(key, input_dim, d_model, nhead, num_layers, dim_feedforward, horizon):
    def dense(key, fan_in, fan_out):
        kw, kb = jax.random.split(key)
        scale = 1.0 / jnp.sqrt(fan_in)
        w = jax.random.uniform(kw, (fan_in, fan_out), jnp.float32, -scale, scale)
        b = jax.random.uniform(kb, (1, fan_out), jnp.float32, -scale, scale)
        return w, b

    keys = jax.random.split(key, 2 + num_layers)
    params = {}
    params["input_w"], params["input_b"] = dense(keys[0], input_dim, d_model)
    params["out_w"], params["out_b"] = dense(keys[1], d_model, horizon)
    layers = []
    for l in range(num_layers):
        lk = jax.random.split(keys[2 + l], 6)
        layer = {}
        layer["wq"], layer["bq"] = dense(lk[0], d_model, d_model)
        layer["wk"], layer["bk"] = dense(lk[1], d_model, d_model)
        layer["wv"], layer["bv"] = dense(lk[2], d_model, d_model)
        layer["wo"], layer["bo"] = dense(lk[3], d_model, d_model)
        layer["w1"], layer["b1"] = dense(lk[4], d_model, dim_feedforward)
        layer["w2"], layer["b2"] = dense(lk[5], dim_feedforward, d_model)
        layer["ln1_g"] = jnp.ones((1, d_model), jnp.float32)
        layer["ln1_b"] = jnp.zeros((1, d_model), jnp.float32)
        layer["ln2_g"] = jnp.ones((1, d_model), jnp.float32)
        layer["ln2_b"] = jnp.zeros((1, d_model), jnp.float32)
        layers.append(layer)
    params["layers"] = layers
    return params


def prepare_params(params, *, nhead):
    """Fuse Q/K/V weights, reshape W_o per head, cast matmul weights to bf16,
    pad the output-linear lane dim to a multiple of 128."""
    d_model = params["input_w"].shape[1]
    head_dim = d_model // nhead
    horizon = params["out_w"].shape[1]
    n_pad = ((horizon + 127) // 128) * 128

    out_w = jnp.zeros((d_model, n_pad), jnp.float32).at[:, :horizon].set(params["out_w"])
    out_b = jnp.zeros((1, n_pad), jnp.float32).at[:, :horizon].set(params["out_b"])

    prepped = {
        "input_w": params["input_w"].astype(jnp.bfloat16),
        "input_b": params["input_b"],
        "out_w": out_w.astype(jnp.bfloat16),
        "out_b": out_b,
        "layers": [],
    }
    for layer in params["layers"]:
        wqkv = jnp.concatenate([layer["wq"], layer["wk"], layer["wv"]], axis=1)
        bqkv = jnp.concatenate([layer["bq"], layer["bk"], layer["bv"]], axis=1)
        prepped["layers"].append({
            "wqkv": wqkv.astype(jnp.bfloat16),
            "bqkv": bqkv,
            "wo_h": layer["wo"].reshape(nhead, head_dim, d_model).astype(jnp.bfloat16),
            "bo": layer["bo"],
            "ln1_g": layer["ln1_g"], "ln1_b": layer["ln1_b"],
            "w1": layer["w1"].astype(jnp.bfloat16), "b1": layer["b1"],
            "w2": layer["w2"].astype(jnp.bfloat16), "b2": layer["b2"],
            "ln2_g": layer["ln2_g"], "ln2_b": layer["ln2_b"],
        })
    return prepped


# ----------------------------------------------------------------------------
# Forward pass
# ----------------------------------------------------------------------------
def transformer_regressor_forward(src, params, *, nhead, horizon):
    B, S, input_dim = src.shape
    d_model = params["input_w"].shape[1]
    head_dim = d_model // nhead
    scale = 1.0 / float(head_dim) ** 0.5

    # input_linear
    x = linear(src.reshape(B * S, input_dim), params["input_w"], params["input_b"])

    for layer in params["layers"]:
        # fused QKV projection (one wide matmul instead of three)
        qkv = linear(x, layer["wqkv"], layer["bqkv"])                  # (B*S, 3D)
        # single cheap layout transpose to head-major: (B, 3H, S, Dh)
        qkv4 = qkv.reshape(B, S, 3 * nhead, head_dim).transpose(0, 2, 1, 3)
        # attention + W_o + residual + LayerNorm1, all heads per grid step
        x = attention_block(qkv4, layer["wo_h"], layer["bo"],
                            x.reshape(B, S, d_model),
                            layer["ln1_g"], layer["ln1_b"],
                            nhead=nhead, scale=scale)
        x = x.reshape(B * S, d_model)
        # fused FFN + residual + LayerNorm2 (dim_ff intermediate stays in VMEM)
        x = ffn_residual_layernorm(x, layer["w1"], layer["b1"],
                                   layer["w2"], layer["b2"],
                                   layer["ln2_g"], layer["ln2_b"])

    # mean over sequence + output_linear (lane-padded), slice + view(B, horizon, 1)
    out = pool_output_linear(x.reshape(B, S, d_model), params["out_w"], params["out_b"])
    return out[:, :horizon].reshape(B, horizon, 1)


# TODO(synk): the stray `Bidirectional(LSTM(...))` line in the source file is Keras
# code outside the module and is not part of TransformerRegressor.forward.
# Dropout (nn.TransformerEncoderLayer default p=0.1) is the identity in eval mode
# and is therefore omitted.


if __name__ == "__main__":
    # Small shapes consistent with the module's forward.
    B, S = 2, 8
    input_dim, d_model, nhead, num_layers, dim_feedforward, horizon = 10, 32, 4, 2, 64, 3

    key = jax.random.PRNGKey(0)
    k_src, k_par = jax.random.split(key)
    src = jax.random.normal(k_src, (B, S, input_dim), jnp.float32)
    params = init_params(k_par, input_dim, d_model, nhead, num_layers,
                         dim_feedforward, horizon)
    prepped = prepare_params(params, nhead=nhead)

    fwd = jax.jit(partial(transformer_regressor_forward, nhead=nhead, horizon=horizon))
    out = fwd(src, prepped)
    out = jax.block_until_ready(out)
    assert out.shape == (B, horizon, 1), out.shape
    assert bool(jnp.all(jnp.isfinite(out)))
    print("KERNEL_OK")
</pallas_src>

<mosaic_0001>
module attributes {stable_mosaic.version = 11 : i64} {
  func.func @_linear_kernel(%arg0: i32, %arg1: memref<16x32xf32, #tpu.memory_space<vmem>>, %arg2: memref<32x96xbf16, #tpu.memory_space<vmem>>, %arg3: memref<1x96xf32, #tpu.memory_space<vmem>>, %arg4: memref<16x96xf32, #tpu.memory_space<vmem>>) attributes {dimension_semantics = [#tpu.dimension_semantics<parallel>], iteration_bounds = array<i64: 1>, scalar_prefetch = 0 : i64, scratch_operands = 0 : i64, tpu.core_type = #tpu.core_type<tc>, window_params = [{transform_indices = @transform_0, window_bounds = array<i64: 16, 32>}, {pipeline_mode = #tpu.pipeline_mode<synchronous>, transform_indices = @transform_1, window_bounds = array<i64: 32, 96>}, {pipeline_mode = #tpu.pipeline_mode<synchronous>, transform_indices = @transform_2, window_bounds = array<i64: 1, 96>}, {transform_indices = @transform_3, window_bounds = array<i64: 16, 96>}]} {
    %c0 = arith.constant 0 : index
    %c0_0 = arith.constant 0 : index
    %0 = vector.load %arg1[%c0, %c0_0] : memref<16x32xf32, #tpu.memory_space<vmem>>, vector<16x32xf32>
    %1 = arith.truncf %0 : vector<16x32xf32> to vector<16x32xbf16>
    %c0_1 = arith.constant 0 : index
    %c0_2 = arith.constant 0 : index
    %2 = vector.load %arg2[%c0_1, %c0_2] : memref<32x96xbf16, #tpu.memory_space<vmem>>, vector<32x96xbf16>
    %cst = arith.constant dense<0.000000e+00> : vector<16x96xf32>
    %3 = tpu.matmul %1, %2, %cst {dimension_numbers = #tpu.dot_dimension_numbers<[1], [0], [0], [1], [0, 0, 1, 1], [], []>} : vector<16x32xbf16>, vector<32x96xbf16>, vector<16x96xf32> -> vector<16x96xf32>
    %c0_3 = arith.constant 0 : index
    %c0_4 = arith.constant 0 : index
    %4 = vector.load %arg3[%c0_3, %c0_4] : memref<1x96xf32, #tpu.memory_space<vmem>>, vector<1x96xf32>
    %5 = vector.broadcast %4 : vector<1x96xf32> to vector<16x96xf32>
    %6 = arith.addf %3, %5 : vector<16x96xf32>
    %c0_5 = arith.constant 0 : index
    %c0_6 = arith.constant 0 : index
    %7 = vector.load %arg4[%c0_5, %c0_6] : memref<16x96xf32, #tpu.memory_space<vmem>>, vector<16x96xf32>
    tpu.vector_store %arg4[%c0_5, %c0_6], %6 {strides = array<i32>} : memref<16x96xf32, #tpu.memory_space<vmem>>, vector<16x96xf32>,
    return
  }
  func.func @transform_0(%arg0: i32) -> (i32, i32) {
    %c0_i32 = arith.constant 0 : i32
    %c0_i32_0 = arith.constant 0 : i32
    return %arg0, %c0_i32 : i32, i32
  }
  func.func @transform_1(%arg0: i32) -> (i32, i32) {
    %c0_i32 = arith.constant 0 : i32
    %c0_i32_0 = arith.constant 0 : i32
    %c0_i32_1 = arith.constant 0 : i32
    return %c0_i32, %c0_i32_0 : i32, i32
  }
  func.func @transform_2(%arg0: i32) -> (i32, i32) {
    %c0_i32 = arith.constant 0 : i32
    %c0_i32_0 = arith.constant 0 : i32
    %c0_i32_1 = arith.constant 0 : i32
    return %c0_i32, %c0_i32_0 : i32, i32
  }
  func.func @transform_3(%arg0: i32) -> (i32, i32) {
    %c0_i32 = arith.constant 0 : i32
    %c0_i32_0 = arith.constant 0 : i32
    return %arg0, %c0_i32 : i32, i32
  }
}

module attributes {stable_mosaic.version = 11 : i64} {
  func.func @_linear_kernel(%arg0: i32, %arg1: memref<16x10xf32, #tpu.memory_space<vmem>>, %arg2: memref<10x32xbf16, #tpu.memory_space<vmem>>, %arg3: memref<1x32xf32, #tpu.memory_space<vmem>>, %arg4: memref<16x32xf32, #tpu.memory_space<vmem>>) attributes {dimension_semantics = [#tpu.dimension_semantics<parallel>], iteration_bounds = array<i64: 1>, scalar_prefetch = 0 : i64, scratch_operands = 0 : i64, tpu.core_type = #tpu.core_type<tc>, window_params = [{transform_indices = @transform_0, window_bounds = array<i64: 16, 10>}, {pipeline_mode = #tpu.pipeline_mode<synchronous>, transform_indices = @transform_1, window_bounds = array<i64: 10, 32>}, {pipeline_mode = #tpu.pipeline_mode<synchronous>, transform_indices = @transform_2, window_bounds = array<i64: 1, 32>}, {transform_indices = @transform_3, window_bounds = array<i64: 16, 32>}]} {
    %c0 = arith.constant 0 : index
    %c0_0 = arith.constant 0 : index
    %0 = vector.load %arg1[%c0, %c0_0] : memref<16x10xf32, #tpu.memory_space<vmem>>, vector<16x10xf32>
    %1 = arith.truncf %0 : vector<16x10xf32> to vector<16x10xbf16>
    %c0_1 = arith.constant 0 : index
    %c0_2 = arith.constant 0 : index
    %2 = vector.load %arg2[%c0_1, %c0_2] : memref<10x32xbf16, #tpu.memory_space<vmem>>, vector<10x32xbf16>
    %cst = arith.constant dense<0.000000e+00> : vector<16x32xf32>
    %3 = tpu.matmul %1, %2, %cst {dimension_numbers = #tpu.dot_dimension_numbers<[1], [0], [0], [1], [0, 0, 1, 1], [], []>} : vector<16x10xbf16>, vector<10x32xbf16>, vector<16x32xf32> -> vector<16x32xf32>
    %c0_3 = arith.constant 0 : index
    %c0_4 = arith.constant 0 : index
    %4 = vector.load %arg3[%c0_3, %c0_4] : memref<1x32xf32, #tpu.memory_space<vmem>>, vector<1x32xf32>
    %5 = vector.broadcast %4 : vector<1x32xf32> to vector<16x32xf32>
    %6 = arith.addf %3, %5 : vector<16x32xf32>
    %c0_5 = arith.constant 0 : index
    %c0_6 = arith.constant 0 : index
    %7 = vector.load %arg4[%c0_5, %c0_6] : memref<16x32xf32, #tpu.memory_space<vmem>>, vector<16x32xf32>
    tpu.vector_store %arg4[%c0_5, %c0_6], %6 {strides = array<i32>} : memref<16x32xf32, #tpu.memory_space<vmem>>, vector<16x32xf32>,
    return
  }
  func.func @transform_0(%arg0: i32) -> (i32, i32) {
    %c0_i32 = arith.constant 0 : i32
    %c0_i32_0 = arith.constant 0 : i32
    return %arg0, %c0_i32 : i32, i32
  }
  func.func @transform_1(%arg0: i32) -> (i32, i32) {
    %c0_i32 = arith.constant 0 : i32
    %c0_i32_0 = arith.constant 0 : i32
    %c0_i32_1 = arith.constant 0 : i32
    return %c0_i32, %c0_i32_0 : i32, i32
  }
  func.func @transform_2(%arg0: i32) -> (i32, i32) {
    %c0_i32 = arith.constant 0 : i32
    %c0_i32_0 = arith.constant 0 : i32
    %c0_i32_1 = arith.constant 0 : i32
    return %c0_i32, %c0_i32_0 : i32, i32
  }
  func.func @transform_3(%arg0: i32) -> (i32, i32) {
    %c0_i32 = arith.constant 0 : i32
    %c0_i32_0 = arith.constant 0 : i32
    return %arg0, %c0_i32 : i32, i32
  }
}

module attributes {stable_mosaic.version = 11 : i64} {
  func.func @_attn_ln_kernel(%arg0: i32, %arg1: memref<1x12x8x8xf32, #tpu.memory_space<vmem>>, %arg2: memref<4x8x32xbf16, #tpu.memory_space<vmem>>, %arg3: memref<1x32xf32, #tpu.memory_space<vmem>>, %arg4: memref<1x8x32xf32, #tpu.memory_space<vmem>>, %arg5: memref<1x32xf32, #tpu.memory_space<vmem>>, %arg6: memref<1x32xf32, #tpu.memory_space<vmem>>, %arg7: memref<1x8x32xf32, #tpu.memory_space<vmem>>) attributes {dimension_semantics = [#tpu.dimension_semantics<parallel>], iteration_bounds = array<i64: 2>, scalar_prefetch = 0 : i64, scratch_operands = 0 : i64, tpu.core_type = #tpu.core_type<tc>, window_params = [{transform_indices = @transform_0, window_bounds = array<i64: 1, 12, 8, 8>}, {pipeline_mode = #tpu.pipeline_mode<synchronous>, transform_indices = @transform_1, window_bounds = array<i64: 4, 8, 32>}, {pipeline_mode = #tpu.pipeline_mode<synchronous>, transform_indices = @transform_2, window_bounds = array<i64: 1, 32>}, {transform_indices = @transform_3, window_bounds = array<i64: 1, 8, 32>}, {pipeline_mode = #tpu.pipeline_mode<synchronous>, transform_indices = @transform_4, window_bounds = array<i64: 1, 32>}, {pipeline_mode = #tpu.pipeline_mode<synchronous>, transform_indices = @transform_5, window_bounds = array<i64: 1, 32>}, {transform_indices = @transform_6, window_bounds = array<i64: 1, 8, 32>}]} {
    %c0 = arith.constant 0 : index
    %c0_0 = arith.constant 0 : index
    %c0_1 = arith.constant 0 : index
    %c0_2 = arith.constant 0 : index
    %0 = vector.load %arg1[%c0, %c0_0, %c0_1, %c0_2] : memref<1x12x8x8xf32, #tpu.memory_space<vmem>>, vector<1x12x8x8xf32>
    %1 = vector.shape_cast %0 : vector<1x12x8x8xf32> to vector<12x8x8xf32>
    %2 = vector.extract_strided_slice %1 {offsets = [0, 0, 0], sizes = [4, 8, 8], strides = [1, 1, 1]} : vector<12x8x8xf32> to vector<4x8x8xf32>
    %3 = arith.truncf %2 : vector<4x8x8xf32> to vector<4x8x8xbf16>
    %4 = vector.extract_strided_slice %1 {offsets = [4, 0, 0], sizes = [4, 8, 8], strides = [1, 1, 1]} : vector<12x8x8xf32> to vector<4x8x8xf32>
    %5 = arith.truncf %4 : vector<4x8x8xf32> to vector<4x8x8xbf16>
    %6 = vector.extract_strided_slice %1 {offsets = [8, 0, 0], sizes = [4, 8, 8], strides = [1, 1, 1]} : vector<12x8x8xf32> to vector<4x8x8xf32>
    %7 = arith.truncf %6 : vector<4x8x8xf32> to vector<4x8x8xbf16>
    "tpu.trace_start"() <{level = 10 : i32, message = "hqd,hkd->hqk"}> : () -> ()
    %cst = arith.constant dense<0.000000e+00> : vector<4x8x8xf32>
    %8 = tpu.matmul %3, %5, %cst {dimension_numbers = #tpu.dot_dimension_numbers<[2], [2], [1], [1], [0, 0, 0, 1, 1, 1], [0], [0]>} : vector<4x8x8xbf16>, vector<4x8x8xbf16>, vector<4x8x8xf32> -> vector<4x8x8xf32>
    "tpu.trace_stop"() : () -> ()
    %cst_3 = arith.constant 0.353553385 : f32
    %9 = vector.broadcast %cst_3 : f32 to vector<4x8x8xf32>
    %10 = arith.mulf %8, %9 : vector<4x8x8xf32>
    %cst_4 = arith.constant dense<0xFF800000> : vector<4x8xf32>
    %11 = vector.multi_reduction <maximumf>, %10, %cst_4 [2] : vector<4x8x8xf32> to vector<4x8xf32>
    %12 = vector.shape_cast %11 : vector<4x8xf32> to vector<4x8x1xf32>
    %13 = vector.broadcast %12 : vector<4x8x1xf32> to vector<4x8x8xf32>
    %14 = arith.subf %10, %13 : vector<4x8x8xf32>
    %15 = math.exp %14 : vector<4x8x8xf32>
    %cst_5 = arith.constant dense<0.000000e+00> : vector<4x8xf32>
    %16 = vector.multi_reduction <add>, %15, %cst_5 [2] : vector<4x8x8xf32> to vector<4x8xf32>
    %17 = vector.shape_cast %16 : vector<4x8xf32> to vector<4x8x1xf32>
    %18 = tpu.reciprocal %17 {approx = true} : vector<4x8x1xf32> -> vector<4x8x1xf32>
    %19 = vector.broadcast %18 : vector<4x8x1xf32> to vector<4x8x8xf32>
    %20 = arith.mulf %15, %19 : vector<4x8x8xf32>
    %21 = arith.truncf %20 : vector<4x8x8xf32> to vector<4x8x8xbf16>
    "tpu.trace_start"() <{level = 10 : i32, message = "hqk,hkd->hqd"}> : () -> ()
    %cst_6 = arith.constant dense<0.000000e+00> : vector<4x8x8xf32>
    %22 = tpu.matmul %21, %7, %cst_6 {dimension_numbers = #tpu.dot_dimension_numbers<[2], [1], [1], [2], [0, 0, 0, 1, 1, 2], [0], [0]>} : vector<4x8x8xbf16>, vector<4x8x8xbf16>, vector<4x8x8xf32> -> vector<4x8x8xf32>
    "tpu.trace_stop"() : () -> ()
    %23 = arith.truncf %22 : vector<4x8x8xf32> to vector<4x8x8xbf16>
    %c0_7 = arith.constant 0 : index
    %c0_8 = arith.constant 0 : index
    %c0_9 = arith.constant 0 : index
    %24 = vector.load %arg2[%c0_7, %c0_8, %c0_9] : memref<4x8x32xbf16, #tpu.memory_space<vmem>>, vector<4x8x32xbf16>
    "tpu.trace_start"() <{level = 10 : i32, message = "hqd,hde->hqe"}> : () -> ()
    %cst_10 = arith.constant dense<0.000000e+00> : vector<4x8x32xf32>
    %25 = tpu.matmul %23, %24, %cst_10 {dimension_numbers = #tpu.dot_dimension_numbers<[2], [1], [1], [2], [0, 0, 0, 1, 1, 2], [0], [0]>} : vector<4x8x8xbf16>, vector<4x8x32xbf16>, vector<4x8x32xf32> -> vector<4x8x32xf32>
    "tpu.trace_stop"() : () -> ()
    %cst_11 = arith.constant dense<0.000000e+00> : vector<8x32xf32>
    %26 = vector.multi_reduction <add>, %25, %cst_11 [0] : vector<4x8x32xf32> to vector<8x32xf32>
    %c0_12 = arith.constant 0 : index
    %c0_13 = arith.constant 0 : index
    %27 = vector.load %arg3[%c0_12, %c0_13] : memref<1x32xf32, #tpu.memory_space<vmem>>, vector<1x32xf32>
    %28 = vector.broadcast %27 : vector<1x32xf32> to vector<8x32xf32>
    %29 = arith.addf %26, %28 : vector<8x32xf32>
    %c0_14 = arith.constant 0 : index
    %c0_15 = arith.constant 0 : index
    %c0_16 = arith.constant 0 : index
    %30 = vector.load %arg4[%c0_14, %c0_15, %c0_16] : memref<1x8x32xf32, #tpu.memory_space<vmem>>, vector<1x8x32xf32>
    %31 = vector.shape_cast %30 : vector<1x8x32xf32> to vector<8x32xf32>
    %32 = arith.addf %29, %31 : vector<8x32xf32>
    %cst_17 = arith.constant dense<0.000000e+00> : vector<8xf32>
    %33 = vector.multi_reduction <add>, %32, %cst_17 [1] : vector<8x32xf32> to vector<8xf32>
    %34 = vector.shape_cast %33 : vector<8xf32> to vector<8x1xf32>
    %cst_18 = arith.constant 3.200000e+01 : f32
    %35 = vector.broadcast %cst_18 : f32 to vector<8x1xf32>
    %36 = arith.divf %34, %35 : vector<8x1xf32>
    %37 = vector.broadcast %36 : vector<8x1xf32> to vector<8x32xf32>
    %38 = arith.subf %32, %37 : vector<8x32xf32>
    %39 = arith.mulf %38, %38 : vector<8x32xf32>
    %cst_19 = arith.constant dense<0.000000e+00> : vector<8xf32>
    %40 = vector.multi_reduction <add>, %39, %cst_19 [1] : vector<8x32xf32> to vector<8xf32>
    %41 = vector.shape_cast %40 : vector<8xf32> to vector<8x1xf32>
    %cst_20 = arith.constant 3.200000e+01 : f32
    %42 = vector.broadcast %cst_20 : f32 to vector<8x1xf32>
    %43 = arith.divf %41, %42 : vector<8x1xf32>
    %44 = vector.broadcast %36 : vector<8x1xf32> to vector<8x32xf32>
    %45 = arith.subf %32, %44 : vector<8x32xf32>
    %cst_21 = arith.constant 9.99999974E-6 : f32
    %46 = vector.broadcast %cst_21 : f32 to vector<8x1xf32>
    %47 = arith.addf %43, %46 : vector<8x1xf32>
    %48 = math.rsqrt %47 : vector<8x1xf32>
    %49 = vector.broadcast %48 : vector<8x1xf32> to vector<8x32xf32>
    %50 = arith.mulf %45, %49 : vector<8x32xf32>
    %c0_22 = arith.constant 0 : index
    %c0_23 = arith.constant 0 : index
    %51 = vector.load %arg5[%c0_22, %c0_23] : memref<1x32xf32, #tpu.memory_space<vmem>>, vector<1x32xf32>
    %52 = vector.broadcast %51 : vector<1x32xf32> to vector<8x32xf32>
    %53 = arith.mulf %50, %52 : vector<8x32xf32>
    %c0_24 = arith.constant 0 : index
    %c0_25 = arith.constant 0 : index
    %54 = vector.load %arg6[%c0_24, %c0_25] : memref<1x32xf32, #tpu.memory_space<vmem>>, vector<1x32xf32>
    %55 = vector.broadcast %54 : vector<1x32xf32> to vector<8x32xf32>
    %56 = arith.addf %53, %55 : vector<8x32xf32>
    %c0_26 = arith.constant 0 : index
    %c0_27 = arith.constant 0 : index
    %c0_28 = arith.constant 0 : index
    %57 = vector.load %arg7[%c0_26, %c0_27, %c0_28] : memref<1x8x32xf32, #tpu.memory_space<vmem>>, vector<1x8x32xf32>
    %58 = vector.shape_cast %57 : vector<1x8x32xf32> to vector<8x32xf32>
    %59 = vector.shape_cast %56 : vector<8x32xf32> to vector<1x8x32xf32>
    tpu.vector_store %arg7[%c0_26, %c0_27, %c0_28], %59 {strides = array<i32>} : memref<1x8x32xf32, #tpu.memory_space<vmem>>, vector<1x8x32xf32>,
    return
  }
  func.func @transform_0(%arg0: i32) -> (i32, i32, i32, i32) {
    %c0_i32 = arith.constant 0 : i32
    %c0_i32_0 = arith.constant 0 : i32
    %c0_i32_1 = arith.constant 0 : i32
    %c0_i32_2 = arith.constant 0 : i32
    return %arg0, %c0_i32, %c0_i32_0, %c0_i32_1 : i32, i32, i32, i32
  }
  func.func @transform_1(%arg0: i32) -> (i32, i32, i32) {
    %c0_i32 = arith.constant 0 : i32
    %c0_i32_0 = arith.constant 0 : i32
    %c0_i32_1 = arith.constant 0 : i32
    %c0_i32_2 = arith.constant 0 : i32
    return %c0_i32, %c0_i32_0, %c0_i32_1 : i32, i32, i32
  }
  func.func @transform_2(%arg0: i32) -> (i32, i32) {
    %c0_i32 = arith.constant 0 : i32
    %c0_i32_0 = arith.constant 0 : i32
    %c0_i32_1 = arith.constant 0 : i32
    return %c0_i32, %c0_i32_0 : i32, i32
  }
  func.func @transform_3(%arg0: i32) -> (i32, i32, i32) {
    %c0_i32 = arith.constant 0 : i32
    %c0_i32_0 = arith.constant 0 : i32
    %c0_i32_1 = arith.constant 0 : i32
    return %arg0, %c0_i32, %c0_i32_0 : i32, i32, i32
  }
  func.func @transform_4(%arg0: i32) -> (i32, i32) {
    %c0_i32 = arith.constant 0 : i32
    %c0_i32_0 = arith.constant 0 : i32
    %c0_i32_1 = arith.constant 0 : i32
    return %c0_i32, %c0_i32_0 : i32, i32
  }
  func.func @transform_5(%arg0: i32) -> (i32, i32) {
    %c0_i32 = arith.constant 0 : i32
    %c0_i32_0 = arith.constant 0 : i32
    %c0_i32_1 = arith.constant 0 : i32
    return %c0_i32, %c0_i32_0 : i32, i32
  }
  func.func @transform_6(%arg0: i32) -> (i32, i32, i32) {
    %c0_i32 = arith.constant 0 : i32
    %c0_i32_0 = arith.constant 0 : i32
    %c0_i32_1 = arith.constant 0 : i32
    return %arg0, %c0_i32, %c0_i32_0 : i32, i32, i32
  }
}

module attributes {stable_mosaic.version = 11 : i64} {
  func.func @_ffn_ln_kernel(%arg0: i32, %arg1: memref<16x32xf32, #tpu.memory_space<vmem>>, %arg2: memref<32x64xbf16, #tpu.memory_space<vmem>>, %arg3: memref<1x64xf32, #tpu.memory_space<vmem>>, %arg4: memref<64x32xbf16, #tpu.memory_space<vmem>>, %arg5: memref<1x32xf32, #tpu.memory_space<vmem>>, %arg6: memref<1x32xf32, #tpu.memory_space<vmem>>, %arg7: memref<1x32xf32, #tpu.memory_space<vmem>>, %arg8: memref<16x32xf32, #tpu.memory_space<vmem>>) attributes {dimension_semantics = [#tpu.dimension_semantics<parallel>], iteration_bounds = array<i64: 1>, scalar_prefetch = 0 : i64, scratch_operands = 0 : i64, tpu.core_type = #tpu.core_type<tc>, window_params = [{transform_indices = @transform_0, window_bounds = array<i64: 16, 32>}, {pipeline_mode = #tpu.pipeline_mode<synchronous>, transform_indices = @transform_1, window_bounds = array<i64: 32, 64>}, {pipeline_mode = #tpu.pipeline_mode<synchronous>, transform_indices = @transform_2, window_bounds = array<i64: 1, 64>}, {pipeline_mode = #tpu.pipeline_mode<synchronous>, transform_indices = @transform_3, window_bounds = array<i64: 64, 32>}, {pipeline_mode = #tpu.pipeline_mode<synchronous>, transform_indices = @transform_4, window_bounds = array<i64: 1, 32>}, {pipeline_mode = #tpu.pipeline_mode<synchronous>, transform_indices = @transform_5, window_bounds = array<i64: 1, 32>}, {pipeline_mode = #tpu.pipeline_mode<synchronous>, transform_indices = @transform_6, window_bounds = array<i64: 1, 32>}, {transform_indices = @transform_7, window_bounds = array<i64: 16, 32>}]} {
    %c0 = arith.constant 0 : index
    %c0_0 = arith.constant 0 : index
    %0 = vector.load %arg1[%c0, %c0_0] : memref<16x32xf32, #tpu.memory_space<vmem>>, vector<16x32xf32>
    %1 = arith.truncf %0 : vector<16x32xf32> to vector<16x32xbf16>
    %c0_1 = arith.constant 0 : index
    %c0_2 = arith.constant 0 : index
    %2 = vector.load %arg2[%c0_1, %c0_2] : memref<32x64xbf16, #tpu.memory_space<vmem>>, vector<32x64xbf16>
    %cst = arith.constant dense<0.000000e+00> : vector<16x64xf32>
    %3 = tpu.matmul %1, %2, %cst {dimension_numbers = #tpu.dot_dimension_numbers<[1], [0], [0], [1], [0, 0, 1, 1], [], []>} : vector<16x32xbf16>, vector<32x64xbf16>, vector<16x64xf32> -> vector<16x64xf32>
    %c0_3 = arith.constant 0 : index
    %c0_4 = arith.constant 0 : index
    %4 = vector.load %arg3[%c0_3, %c0_4] : memref<1x64xf32, #tpu.memory_space<vmem>>, vector<1x64xf32>
    %5 = vector.broadcast %4 : vector<1x64xf32> to vector<16x64xf32>
    %6 = arith.addf %3, %5 : vector<16x64xf32>
    %cst_5 = arith.constant 0.000000e+00 : f32
    %7 = vector.broadcast %cst_5 : f32 to vector<16x64xf32>
    %8 = arith.maximumf %6, %7 : vector<16x64xf32>
    %9 = arith.truncf %8 : vector<16x64xf32> to vector<16x64xbf16>
    %c0_6 = arith.constant 0 : index
    %c0_7 = arith.constant 0 : index
    %10 = vector.load %arg4[%c0_6, %c0_7] : memref<64x32xbf16, #tpu.memory_space<vmem>>, vector<64x32xbf16>
    %cst_8 = arith.constant dense<0.000000e+00> : vector<16x32xf32>
    %11 = tpu.matmul %9, %10, %cst_8 {dimension_numbers = #tpu.dot_dimension_numbers<[1], [0], [0], [1], [0, 0, 1, 1], [], []>} : vector<16x64xbf16>, vector<64x32xbf16>, vector<16x32xf32> -> vector<16x32xf32>
    %c0_9 = arith.constant 0 : index
    %c0_10 = arith.constant 0 : index
    %12 = vector.load %arg5[%c0_9, %c0_10] : memref<1x32xf32, #tpu.memory_space<vmem>>, vector<1x32xf32>
    %13 = vector.broadcast %12 : vector<1x32xf32> to vector<16x32xf32>
    %14 = arith.addf %11, %13 : vector<16x32xf32>
    %15 = arith.addf %14, %0 : vector<16x32xf32>
    %cst_11 = arith.constant dense<0.000000e+00> : vector<16xf32>
    %16 = vector.multi_reduction <add>, %15, %cst_11 [1] : vector<16x32xf32> to vector<16xf32>
    %17 = vector.shape_cast %16 : vector<16xf32> to vector<16x1xf32>
    %cst_12 = arith.constant 3.200000e+01 : f32
    %18 = vector.broadcast %cst_12 : f32 to vector<16x1xf32>
    %19 = arith.divf %17, %18 : vector<16x1xf32>
    %20 = vector.broadcast %19 : vector<16x1xf32> to vector<16x32xf32>
    %21 = arith.subf %15, %20 : vector<16x32xf32>
    %22 = arith.mulf %21, %21 : vector<16x32xf32>
    %cst_13 = arith.constant dense<0.000000e+00> : vector<16xf32>
    %23 = vector.multi_reduction <add>, %22, %cst_13 [1] : vector<16x32xf32> to vector<16xf32>
    %24 = vector.shape_cast %23 : vector<16xf32> to vector<16x1xf32>
    %cst_14 = arith.constant 3.200000e+01 : f32
    %25 = vector.broadcast %cst_14 : f32 to vector<16x1xf32>
    %26 = arith.divf %24, %25 : vector<16x1xf32>
    %27 = vector.broadcast %19 : vector<16x1xf32> to vector<16x32xf32>
    %28 = arith.subf %15, %27 : vector<16x32xf32>
    %cst_15 = arith.constant 9.99999974E-6 : f32
    %29 = vector.broadcast %cst_15 : f32 to vector<16x1xf32>
    %30 = arith.addf %26, %29 : vector<16x1xf32>
    %31 = math.rsqrt %30 : vector<16x1xf32>
    %32 = vector.broadcast %31 : vector<16x1xf32> to vector<16x32xf32>
    %33 = arith.mulf %28, %32 : vector<16x32xf32>
    %c0_16 = arith.constant 0 : index
    %c0_17 = arith.constant 0 : index
    %34 = vector.load %arg6[%c0_16, %c0_17] : memref<1x32xf32, #tpu.memory_space<vmem>>, vector<1x32xf32>
    %35 = vector.broadcast %34 : vector<1x32xf32> to vector<16x32xf32>
    %36 = arith.mulf %33, %35 : vector<16x32xf32>
    %c0_18 = arith.constant 0 : index
    %c0_19 = arith.constant 0 : index
    %37 = vector.load %arg7[%c0_18, %c0_19] : memref<1x32xf32, #tpu.memory_space<vmem>>, vector<1x32xf32>
    %38 = vector.broadcast %37 : vector<1x32xf32> to vector<16x32xf32>
    %39 = arith.addf %36, %38 : vector<16x32xf32>
    %c0_20 = arith.constant 0 : index
    %c0_21 = arith.constant 0 : index
    %40 = vector.load %arg8[%c0_20, %c0_21] : memref<16x32xf32, #tpu.memory_space<vmem>>, vector<16x32xf32>
    tpu.vector_store %arg8[%c0_20, %c0_21], %39 {strides = array<i32>} : memref<16x32xf32, #tpu.memory_space<vmem>>, vector<16x32xf32>,
    return
  }
  func.func @transform_0(%arg0: i32) -> (i32, i32) {
    %c0_i32 = arith.constant 0 : i32
    %c0_i32_0 = arith.constant 0 : i32
    return %arg0, %c0_i32 : i32, i32
  }
  func.func @transform_1(%arg0: i32) -> (i32, i32) {
    %c0_i32 = arith.constant 0 : i32
    %c0_i32_0 = arith.constant 0 : i32
    %c0_i32_1 = arith.constant 0 : i32
    return %c0_i32, %c0_i32_0 : i32, i32
  }
  func.func @transform_2(%arg0: i32) -> (i32, i32) {
    %c0_i32 = arith.constant 0 : i32
    %c0_i32_0 = arith.constant 0 : i32
    %c0_i32_1 = arith.constant 0 : i32
    return %c0_i32, %c0_i32_0 : i32, i32
  }
  func.func @transform_3(%arg0: i32) -> (i32, i32) {
    %c0_i32 = arith.constant 0 : i32
    %c0_i32_0 = arith.constant 0 : i32
    %c0_i32_1 = arith.constant 0 : i32
    return %c0_i32, %c0_i32_0 : i32, i32
  }
  func.func @transform_4(%arg0: i32) -> (i32, i32) {
    %c0_i32 = arith.constant 0 : i32
    %c0_i32_0 = arith.constant 0 : i32
    %c0_i32_1 = arith.constant 0 : i32
    return %c0_i32, %c0_i32_0 : i32, i32
  }
  func.func @transform_5(%arg0: i32) -> (i32, i32) {
    %c0_i32 = arith.constant 0 : i32
    %c0_i32_0 = arith.constant 0 : i32
    %c0_i32_1 = arith.constant 0 : i32
    return %c0_i32, %c0_i32_0 : i32, i32
  }
  func.func @transform_6(%arg0: i32) -> (i32, i32) {
    %c0_i32 = arith.constant 0 : i32
    %c0_i32_0 = arith.constant 0 : i32
    %c0_i32_1 = arith.constant 0 : i32
    return %c0_i32, %c0_i32_0 : i32, i32
  }
  func.func @transform_7(%arg0: i32) -> (i32, i32) {
    %c0_i32 = arith.constant 0 : i32
    %c0_i32_0 = arith.constant 0 : i32
    return %arg0, %c0_i32 : i32, i32
  }
}

module attributes {stable_mosaic.version = 11 : i64} {
  func.func @_pool_out_kernel(%arg0: memref<2x8x32xf32, #tpu.memory_space<vmem>>, %arg1: memref<32x128xbf16, #tpu.memory_space<vmem>>, %arg2: memref<1x128xf32, #tpu.memory_space<vmem>>, %arg3: memref<2x128xf32, #tpu.memory_space<vmem>>) attributes {dimension_semantics = [], scalar_prefetch = 0 : i64, scratch_operands = 0 : i64, tpu.core_type = #tpu.core_type<tc>} {
    %c0 = arith.constant 0 : index
    %c0_0 = arith.constant 0 : index
    %c0_1 = arith.constant 0 : index
    %0 = vector.load %arg0[%c0, %c0_0, %c0_1] : memref<2x8x32xf32, #tpu.memory_space<vmem>>, vector<2x8x32xf32>
    %cst = arith.constant dense<0.000000e+00> : vector<2x32xf32>
    %1 = vector.multi_reduction <add>, %0, %cst [1] : vector<2x8x32xf32> to vector<2x32xf32>
    %cst_2 = arith.constant 8.000000e+00 : f32
    %2 = vector.broadcast %cst_2 : f32 to vector<2x32xf32>
    %3 = arith.divf %1, %2 : vector<2x32xf32>
    %4 = arith.truncf %3 : vector<2x32xf32> to vector<2x32xbf16>
    %c0_3 = arith.constant 0 : index
    %c0_4 = arith.constant 0 : index
    %5 = vector.load %arg1[%c0_3, %c0_4] : memref<32x128xbf16, #tpu.memory_space<vmem>>, vector<32x128xbf16>
    %cst_5 = arith.constant dense<0.000000e+00> : vector<2x128xf32>
    %6 = tpu.matmul %4, %5, %cst_5 {dimension_numbers = #tpu.dot_dimension_numbers<[1], [0], [0], [1], [0, 0, 1, 1], [], []>} : vector<2x32xbf16>, vector<32x128xbf16>, vector<2x128xf32> -> vector<2x128xf32>
    %c0_6 = arith.constant 0 : index
    %c0_7 = arith.constant 0 : index
    %7 = vector.load %arg2[%c0_6, %c0_7] : memref<1x128xf32, #tpu.memory_space<vmem>>, vector<1x128xf32>
    %8 = vector.broadcast %7 : vector<1x128xf32> to vector<2x128xf32>
    %9 = arith.addf %6, %8 : vector<2x128xf32>
    %c0_8 = arith.constant 0 : index
    %c0_9 = arith.constant 0 : index
    %10 = vector.load %arg3[%c0_8, %c0_9] : memref<2x128xf32, #tpu.memory_space<vmem>>, vector<2x128xf32>
    tpu.vector_store %arg3[%c0_8, %c0_9], %9 {strides = array<i32>} : memref<2x128xf32, #tpu.memory_space<vmem>>, vector<2x128xf32>,
    return
  }
}

</mosaic_0001>

<llo_original>
// kernel: transformer_regressor_forward.9
$region0: #{transformer_regressor_forward.9}
  #allocation0 [shape = 'u32[]', space=smem, size = 0x4, offset = 0x4, fixed_abs, tag = 'smem constant byte address 0x4 - core index']
  #allocation1 [shape = 'u32[144,128]{1,0:T(1,128)}', space=vmem, size = 0x12000, scoped, tag = 'internal scratch']
  %s0 = inlined_call_operand.vmem [shape: f32[16,32], index: 0, kind: input, shape index: {}]
  %s1 = inlined_call_operand.vmem [shape: bf16[32,96], index: 1, kind: input, shape index: {}]
  %s2 = inlined_call_operand.vmem [shape: f32[1,96], index: 2, kind: input, shape index: {}]
  %s3 = inlined_call_operand.vmem [shape: f32[16,96], index: 3, kind: output, shape index: {}]
  %s4 = sld [smem:[#allocation0]]
  $region22: #{transformer_regressor_forward.9} parent=0
    _
  %s6 = ssub.s32 1, %s4
  %s7 = scalar_select 0, %s6, %s4
  // Predicated region
  $region2: #{transformer_regressor_forward.9} parent=0 // pred_check
    _
  $region3: #{transformer_regressor_forward.9} parent=0 // pred_check_branch
    %9 = sbr.rel (0) target = $region5
  $region4: #{transformer_regressor_forward.9} parent=0 // pred_region
    _
  $region5: #{transformer_regressor_forward.9} parent=0 // pred_fallthru
    _
  // Predicated region
  $region6: #{transformer_regressor_forward.9} parent=0 // pred_check
    _
  $region7: #{transformer_regressor_forward.9} parent=0 // pred_check_branch
    %11 = sbr.rel (0) target = $region9
  $region8: #{transformer_regressor_forward.9} parent=0 // pred_region
    _
  $region9: #{transformer_regressor_forward.9} parent=0 // pred_fallthru
    _
  // Predicated region
  $region10: #{transformer_regressor_forward.9} parent=0 // pred_check
    _
  $region11: #{transformer_regressor_forward.9} parent=0 // pred_check_branch
    %13 = sbr.rel (0) target = $region13
  $region12: #{transformer_regressor_forward.9} parent=0 // pred_region
    _
  $region13: #{transformer_regressor_forward.9} parent=0 // pred_fallthru
    _
  %v15 = vld [vmem:[%s0] sm:$0xff]
  %v16 = vld [vmem:[%s0 + $0x8] sm:$0xff]
  %v17 = vpack.c.bf16 %v16, %v15
  %v18 = vld [vmem:[%s1] sm:$0xf]
  %v19 = vld [vmem:[%s1 + $0x4] sm:$0xf]
  %v20 = vld [vmem:[%s1 + $0x8] sm:$0xf]
  %v21 = vld [vmem:[%s1 + $0xc] sm:$0xf]
  %v22 = vld [vmem:[%s2] sm:$0x1]
  %v24 = vlaneseq
  %v25 = vshrl.u32 %v24, 7
  %v26 = vsub.s32 0, %v25
  %v27 = vrot.slane %v22, %v26
  %v33 = vunpack.c.l.b16 %v18
  %v34 = vunpack.c.l.b16 %v19
  %v35 = vunpack.c.l.b16 %v20
  %v36 = vunpack.c.l.b16 %v21
  %v37 = vpack.c.b16 %v34, %v33
  %v38 = vpack.c.b16 %v36, %v35
  %vm41 = vcmask 261120
  %v43 = vsel %vm41, %v17, 0
  %45 = vmatprep.subr.bf16.mxu0 0
  %46 = vmatpush1.bf16.msra.mxu0 %v37
  %47 = vmatprep.subr.bf16.mxu0 0
  %48 = vmatpush1.bf16.msra.mxu0 %v38
  %49 = vmatprep.subr.bf16.mxu0 0
  %50 = vmatpush1.bf16.msra.mxu0 0
  %51 = vmatprep.subr.bf16.mxu0 0
  %52 = vmatpush1.bf16.msra.mxu0 0
  %53 = vmatprep.subr.bf16.mxu0 0
  %54 = vmatpush1.bf16.msra.mxu0 0
  %55 = vmatprep.subr.bf16.mxu0 0
  %56 = vmatpush1.bf16.msra.mxu0 0
  %57 = vmatprep.subr.bf16.mxu0 0
  %58 = vmatpush1.bf16.msra.mxu0 0
  %59 = vmatprep.subr.bf16.mxu0 0
  %60 = vmatpush1.bf16.msra.mxu0 0
  %61 = vmatprep.subr.bf16.mxu0 0
  %62 = vmatpush1.bf16.msra.mxu0 0
  %63 = vmatprep.subr.bf16.mxu0 0
  %64 = vmatpush1.bf16.msra.mxu0 0
  %65 = vmatprep.subr.bf16.mxu0 0
  %66 = vmatpush1.bf16.msra.mxu0 0
  %67 = vmatprep.subr.bf16.mxu0 0
  %68 = vmatpush1.bf16.msra.mxu0 0
  %69 = vmatprep.subr.bf16.mxu0 0
  %70 = vmatpush1.bf16.msra.mxu0 0
  %71 = vmatprep.subr.bf16.mxu0 0
  %72 = vmatpush1.bf16.msra.mxu0 0
  %73 = vmatprep.subr.bf16.mxu0 0
  %74 = vmatpush1.bf16.msra.mxu0 0
  %75 = vmatprep.subr.bf16.mxu0 0
  %76 = vmatpush1.bf16.msra.mxu0 0
  %77 = vmatprep.mubr.bf16.mxu0 0
  %78 = vmatmul.mubr.bf16.gmra.mrb[0].mxu0 %v43
  %v79 = vpop.f32.mrb[0].mxu0
  %v80 = vadd.f32 %v27, %v79
  %v81 = vpop.f32.mrb[0].mxu0
  %v82 = vpop.f32.mrb[0].mxu0
  %v83 = vadd.f32 %v27, %v82
  %v84 = vpop.f32.mrb[0].mxu0
  %85 = vdwg.mxu0
  %vm86 = vcmask 785408
  %87 = vst.msk [vmem:[%s3] sm:$0xff] %vm86, %v80
  %88 = vst.msk [vmem:[%s3 + $0x8] sm:$0xff] %vm86, %v83
  // Predicated region
  $region14: #{transformer_regressor_forward.9} parent=0 // pred_check
    _
  $region15: #{transformer_regressor_forward.9} parent=0 // pred_check_branch
    %90 = sbr.rel (0) target = $region17
  $region16: #{transformer_regressor_forward.9} parent=0 // pred_region
    _
  $region17: #{transformer_regressor_forward.9} parent=0 // pred_fallthru
    _
  // Predicated region
  $region18: #{transformer_regressor_forward.9} parent=0 // pred_check
    _
  $region19: #{transformer_regressor_forward.9} parent=0 // pred_check_branch
    %92 = sbr.rel (0) target = $region21
  $region20: #{transformer_regressor_forward.9} parent=0 // pred_region
    _
  $region21: #{transformer_regressor_forward.9} parent=0 // pred_fallthru
    _

// kernel: transformer_regressor_forward.8
$region0: #{transformer_regressor_forward.8}
  #allocation0 [shape = 'u32[]', space=smem, size = 0x4, offset = 0x4, fixed_abs, tag = 'smem constant byte address 0x4 - core index']
  #allocation1 [shape = 'u32[144,128]{1,0:T(1,128)}', space=vmem, size = 0x12000, scoped, tag = 'internal scratch']
  %s0 = inlined_call_operand.vmem [shape: f32[16,10], index: 0, kind: input, shape index: {}]
  %s1 = inlined_call_operand.vmem [shape: bf16[10,32], index: 1, kind: input, shape index: {}]
  %s2 = inlined_call_operand.vmem [shape: f32[1,32], index: 2, kind: input, shape index: {}]
  %s3 = inlined_call_operand.vmem [shape: f32[16,32], index: 3, kind: output, shape index: {}]
  %s4 = sld [smem:[#allocation0]]
  $region22: #{transformer_regressor_forward.8} parent=0
    _
  %s6 = ssub.s32 1, %s4
  %s7 = scalar_select 0, %s6, %s4
  // Predicated region
  $region2: #{transformer_regressor_forward.8} parent=0 // pred_check
    _
  $region3: #{transformer_regressor_forward.8} parent=0 // pred_check_branch
    %9 = sbr.rel (0) target = $region5
  $region4: #{transformer_regressor_forward.8} parent=0 // pred_region
    _
  $region5: #{transformer_regressor_forward.8} parent=0 // pred_fallthru
    _
  // Predicated region
  $region6: #{transformer_regressor_forward.8} parent=0 // pred_check
    _
  $region7: #{transformer_regressor_forward.8} parent=0 // pred_check_branch
    %11 = sbr.rel (0) target = $region9
  $region8: #{transformer_regressor_forward.8} parent=0 // pred_region
    _
  $region9: #{transformer_regressor_forward.8} parent=0 // pred_fallthru
    _
  // Predicated region
  $region10: #{transformer_regressor_forward.8} parent=0 // pred_check
    _
  $region11: #{transformer_regressor_forward.8} parent=0 // pred_check_branch
    %13 = sbr.rel (0) target = $region13
  $region12: #{transformer_regressor_forward.8} parent=0 // pred_region
    _
  $region13: #{transformer_regressor_forward.8} parent=0 // pred_fallthru
    _
  %v15 = vld [vmem:[%s0] sm:$0xff]
  %v16 = vld [vmem:[%s0 + $0x8] sm:$0xff]
  %v17 = vpack.c.bf16 %v16, %v15
  %v18 = vld [vmem:[%s1] sm:$0xf]
  %v19 = vld [vmem:[%s1 + $0x4] sm:$0x1]
  %v20 = vld [vmem:[%s2] sm:$0x1]
  %v22 = vlaneseq
  %v23 = vshrl.u32 %v22, 7
  %v24 = vsub.s32 0, %v23
  %v25 = vrot.slane %v20, %v24
  %v29 = vunpack.c.l.b16 %v18
  %v30 = vunpack.c.l.b16 %v19
  %v31 = vpack.c.b16 %v30, %v29
  %vm32 = vcmask 80896
  %v34 = vsel %vm32, %v17, 0
  %vm36 = vcmask 1044480
  %v38 = vsel %vm36, %v31, 0
  %40 = vmatprep.subr.bf16.mxu0 0
  %41 = vmatpush1.bf16.msra.mxu0 %v38
  %42 = vmatprep.subr.bf16.mxu0 0
  %43 = vmatpush1.bf16.msra.mxu0 0
  %44 = vmatprep.subr.bf16.mxu0 0
  %45 = vmatpush1.bf16.msra.mxu0 0
  %46 = vmatprep.subr.bf16.mxu0 0
  %47 = vmatpush1.bf16.msra.mxu0 0
  %48 = vmatprep.subr.bf16.mxu0 0
  %49 = vmatpush1.bf16.msra.mxu0 0
  %50 = vmatprep.subr.bf16.mxu0 0
  %51 = vmatpush1.bf16.msra.mxu0 0
  %52 = vmatprep.subr.bf16.mxu0 0
  %53 = vmatpush1.bf16.msra.mxu0 0
  %54 = vmatprep.subr.bf16.mxu0 0
  %55 = vmatpush1.bf16.msra.mxu0 0
  %56 = vmatprep.subr.bf16.mxu0 0
  %57 = vmatpush1.bf16.msra.mxu0 0
  %58 = vmatprep.subr.bf16.mxu0 0
  %59 = vmatpush1.bf16.msra.mxu0 0
  %60 = vmatprep.subr.bf16.mxu0 0
  %61 = vmatpush1.bf16.msra.mxu0 0
  %62 = vmatprep.subr.bf16.mxu0 0
  %63 = vmatpush1.bf16.msra.mxu0 0
  %64 = vmatprep.subr.bf16.mxu0 0
  %65 = vmatpush1.bf16.msra.mxu0 0
  %66 = vmatprep.subr.bf16.mxu0 0
  %67 = vmatpush1.bf16.msra.mxu0 0
  %68 = vmatprep.subr.bf16.mxu0 0
  %69 = vmatpush1.bf16.msra.mxu0 0
  %70 = vmatprep.subr.bf16.mxu0 0
  %71 = vmatpush1.bf16.msra.mxu0 0
  %72 = vmatprep.mubr.bf16.mxu0 0
  %73 = vmatmul.mubr.bf16.gmra.mrb[0].mxu0 %v34
  %v74 = vpop.f32.mrb[0].mxu0
  %v75 = vadd.f32 %v25, %v74
  %v76 = vpop.f32.mrb[0].mxu0
  %v77 = vpop.f32.mrb[0].mxu0
  %v78 = vadd.f32 %v25, %v77
  %v79 = vpop.f32.mrb[0].mxu0
  %80 = vdwg.mxu0
  %vm81 = vcmask 261120
  %82 = vst.msk [vmem:[%s3] sm:$0xff] %vm81, %v75
  %83 = vst.msk [vmem:[%s3 + $0x8] sm:$0xff] %vm81, %v78
  // Predicated region
  $region14: #{transformer_regressor_forward.8} parent=0 // pred_check
    _
  $region15: #{transformer_regressor_forward.8} parent=0 // pred_check_branch
    %85 = sbr.rel (0) target = $region17
  $region16: #{transformer_regressor_forward.8} parent=0 // pred_region
    _
  $region17: #{transformer_regressor_forward.8} parent=0 // pred_fallthru
    _
  // Predicated region
  $region18: #{transformer_regressor_forward.8} parent=0 // pred_check
    _
  $region19: #{transformer_regressor_forward.8} parent=0 // pred_check_branch
    %87 = sbr.rel (0) target = $region21
  $region20: #{transformer_regressor_forward.8} parent=0 // pred_region
    _
  $region21: #{transformer_regressor_forward.8} parent=0 // pred_fallthru
    _

// kernel: transformer_regressor_forward.11
$region0: #{transformer_regressor_forward.11}
  #allocation0 [shape = 'u32[]', space=smem, size = 0x4, offset = 0x4, fixed_abs, tag = 'smem constant byte address 0x4 - core index']
  #allocation1 [shape = 'u32[144,128]{1,0:T(1,128)}', space=vmem, size = 0x12000, scoped, tag = 'internal scratch']
  %s0 = inlined_call_operand.vmem [shape: f32[16,32], index: 0, kind: input, shape index: {}]
  %s1 = inlined_call_operand.vmem [shape: bf16[32,64], index: 1, kind: input, shape index: {}]
  %s2 = inlined_call_operand.vmem [shape: f32[1,64], index: 2, kind: input, shape index: {}]
  %s3 = inlined_call_operand.vmem [shape: bf16[64,32], index: 3, kind: input, shape index: {}]
  %s4 = inlined_call_operand.vmem [shape: f32[1,32], index: 4, kind: input, shape index: {}]
  %s5 = inlined_call_operand.vmem [shape: f32[1,32], index: 5, kind: input, shape index: {}]
  %s6 = inlined_call_operand.vmem [shape: f32[1,32], index: 6, kind: input, shape index: {}]
  %s7 = inlined_call_operand.vmem [shape: f32[16,32], index: 7, kind: output, shape index: {}]
  %s8 = sld [smem:[#allocation0]]
  $region38: #{transformer_regressor_forward.11} parent=0
    _
  %s10 = ssub.s32 1, %s8
  %s11 = scalar_select 0, %s10, %s8
  // Predicated region
  $region2: #{transformer_regressor_forward.11} parent=0 // pred_check
    _
  $region3: #{transformer_regressor_forward.11} parent=0 // pred_check_branch
    %13 = sbr.rel (0) target = $region5
  $region4: #{transformer_regressor_forward.11} parent=0 // pred_region
    _
  $region5: #{transformer_regressor_forward.11} parent=0 // pred_fallthru
    _
  // Predicated region
  $region6: #{transformer_regressor_forward.11} parent=0 // pred_check
    _
  $region7: #{transformer_regressor_forward.11} parent=0 // pred_check_branch
    %15 = sbr.rel (0) target = $region9
  $region8: #{transformer_regressor_forward.11} parent=0 // pred_region
    _
  $region9: #{transformer_regressor_forward.11} parent=0 // pred_fallthru
    _
  // Predicated region
  $region10: #{transformer_regressor_forward.11} parent=0 // pred_check
    _
  $region11: #{transformer_regressor_forward.11} parent=0 // pred_check_branch
    %17 = sbr.rel (0) target = $region13
  $region12: #{transformer_regressor_forward.11} parent=0 // pred_region
    _
  $region13: #{transformer_regressor_forward.11} parent=0 // pred_fallthru
    _
  // Predicated region
  $region14: #{transformer_regressor_forward.11} parent=0 // pred_check
    _
  $region15: #{transformer_regressor_forward.11} parent=0 // pred_check_branch
    %19 = sbr.rel (0) target = $region17
  $region16: #{transformer_regressor_forward.11} parent=0 // pred_region
    _
  $region17: #{transformer_regressor_forward.11} parent=0 // pred_fallthru
    _
  // Predicated region
  $region18: #{transformer_regressor_forward.11} parent=0 // pred_check
    _
  $region19: #{transformer_regressor_forward.11} parent=0 // pred_check_branch
    %21 = sbr.rel (0) target = $region21
  $region20: #{transformer_regressor_forward.11} parent=0 // pred_region
    _
  $region21: #{transformer_regressor_forward.11} parent=0 // pred_fallthru
    _
  // Predicated region
  $region22: #{transformer_regressor_forward.11} parent=0 // pred_check
    _
  $region23: #{transformer_regressor_forward.11} parent=0 // pred_check_branch
    %23 = sbr.rel (0) target = $region25
  $region24: #{transformer_regressor_forward.11} parent=0 // pred_region
    _
  $region25: #{transformer_regressor_forward.11} parent=0 // pred_fallthru
    _
  // Predicated region
  $region26: #{transformer_regressor_forward.11} parent=0 // pred_check
    _
  $region27: #{transformer_regressor_forward.11} parent=0 // pred_check_branch
    %25 = sbr.rel (0) target = $region29
  $region28: #{transformer_regressor_forward.11} parent=0 // pred_region
    _
  $region29: #{transformer_regressor_forward.11} parent=0 // pred_fallthru
    _
  %v27 = vld [vmem:[%s0] sm:$0xff]
  %v28 = vld [vmem:[%s0 + $0x8] sm:$0xff]
  %v29 = vpack.c.bf16 %v28, %v27
  %v30 = vld [vmem:[%s1] sm:$0xf]
  %v31 = vld [vmem:[%s1 + $0x4] sm:$0xf]
  %v32 = vld [vmem:[%s1 + $0x8] sm:$0xf]
  %v33 = vld [vmem:[%s1 + $0xc] sm:$0xf]
  %v34 = vld [vmem:[%s2] sm:$0x1]
  %v36 = vlaneseq
  %v37 = vshrl.u32 %v36, 7
  %v38 = vsub.s32 0, %v37
  %v39 = vrot.slane %v34, %v38
  %v45 = vunpack.c.l.b16 %v30
  %v46 = vunpack.c.l.b16 %v31
  %v47 = vunpack.c.l.b16 %v32
  %v48 = vunpack.c.l.b16 %v33
  %v49 = vpack.c.b16 %v46, %v45
  %v50 = vpack.c.b16 %v48, %v47
  %vm53 = vcmask 261120
  %v55 = vsel %vm53, %v29, 0
  %57 = vmatprep.subr.bf16.mxu0 0
  %58 = vmatpush1.bf16.msra.mxu0 %v49
  %59 = vmatprep.subr.bf16.mxu0 0
  %60 = vmatpush1.bf16.msra.mxu0 %v50
  %61 = vmatprep.subr.bf16.mxu0 0
  %62 = vmatpush1.bf16.msra.mxu0 0
  %63 = vmatprep.subr.bf16.mxu0 0
  %64 = vmatpush1.bf16.msra.mxu0 0
  %65 = vmatprep.subr.bf16.mxu0 0
  %66 = vmatpush1.bf16.msra.mxu0 0
  %67 = vmatprep.subr.bf16.mxu0 0
  %68 = vmatpush1.bf16.msra.mxu0 0
  %69 = vmatprep.subr.bf16.mxu0 0
  %70 = vmatpush1.bf16.msra.mxu0 0
  %71 = vmatprep.subr.bf16.mxu0 0
  %72 = vmatpush1.bf16.msra.mxu0 0
  %73 = vmatprep.subr.bf16.mxu0 0
  %74 = vmatpush1.bf16.msra.mxu0 0
  %75 = vmatprep.subr.bf16.mxu0 0
  %76 = vmatpush1.bf16.msra.mxu0 0
  %77 = vmatprep.subr.bf16.mxu0 0
  %78 = vmatpush1.bf16.msra.mxu0 0
  %79 = vmatprep.subr.bf16.mxu0 0
  %80 = vmatpush1.bf16.msra.mxu0 0
  %81 = vmatprep.subr.bf16.mxu0 0
  %82 = vmatpush1.bf16.msra.mxu0 0
  %83 = vmatprep.subr.bf16.mxu0 0
  %84 = vmatpush1.bf16.msra.mxu0 0
  %85 = vmatprep.subr.bf16.mxu0 0
  %86 = vmatpush1.bf16.msra.mxu0 0
  %87 = vmatprep.subr.bf16.mxu0 0
  %88 = vmatpush1.bf16.msra.mxu0 0
  %89 = vmatprep.mubr.bf16.mxu0 0
  %90 = vmatmul.mubr.bf16.gmra.mrb[0].mxu0 %v55
  %v91 = vpop.f32.mrb[0].mxu0
  %v92 = vadd.f32 %v39, %v91
  %v93 = vpop.f32.mrb[0].mxu0
  %v94 = vpop.f32.mrb[0].mxu0
  %v95 = vadd.f32 %v39, %v94
  %v96 = vpop.f32.mrb[0].mxu0
  %97 = vdwg.mxu0
  %v98 = vmax.f32 %v92, 0.0
  %v99 = vmax.f32 %v95, 0.0
  %v100 = vpack.c.bf16 %v99, %v98
  %v101 = vld [vmem:[%s3] sm:$0xf]
  %v102 = vld [vmem:[%s3 + $0x4] sm:$0xf]
  %v103 = vld [vmem:[%s3 + $0x8] sm:$0xf]
  %v104 = vld [vmem:[%s3 + $0xc] sm:$0xf]
  %v105 = vld [vmem:[%s3 + $0x10] sm:$0xf]
  %v106 = vld [vmem:[%s3 + $0x14] sm:$0xf]
  %v107 = vld [vmem:[%s3 + $0x18] sm:$0xf]
  %v108 = vld [vmem:[%s3 + $0x1c] sm:$0xf]
  %v109 = vld [vmem:[%s4] sm:$0x1]
  %v111 = vlaneseq
  %v112 = vshrl.u32 %v111, 7
  %v113 = vsub.s32 0, %v112
  %v114 = vrot.slane %v109, %v113
  %v124 = vunpack.c.l.b16 %v101
  %v125 = vunpack.c.l.b16 %v102
  %v126 = vunpack.c.l.b16 %v103
  %v127 = vunpack.c.l.b16 %v104
  %v128 = vunpack.c.l.b16 %v105
  %v129 = vunpack.c.l.b16 %v106
  %v130 = vunpack.c.l.b16 %v107
  %v131 = vunpack.c.l.b16 %v108
  %v132 = vpack.c.b16 %v125, %v124
  %v133 = vpack.c.b16 %v127, %v126
  %v134 = vpack.c.b16 %v129, %v128
  %v135 = vpack.c.b16 %v131, %v130
  %vm140 = vcmask 523264
  %v142 = vsel %vm140, %v100, 0
  %144 = vmatprep.subr.bf16.mxu0 0
  %145 = vmatpush1.bf16.msra.mxu0 %v132
  %146 = vmatprep.subr.bf16.mxu0 0
  %147 = vmatpush1.bf16.msra.mxu0 %v133
  %148 = vmatprep.subr.bf16.mxu0 0
  %149 = vmatpush1.bf16.msra.mxu0 %v134
  %150 = vmatprep.subr.bf16.mxu0 0
  %151 = vmatpush1.bf16.msra.mxu0 %v135
  %152 = vmatprep.subr.bf16.mxu0 0
  %153 = vmatpush1.bf16.msra.mxu0 0
  %154 = vmatprep.subr.bf16.mxu0 0
  %155 = vmatpush1.bf16.msra.mxu0 0
  %156 = vmatprep.subr.bf16.mxu0 0
  %157 = vmatpush1.bf16.msra.mxu0 0
  %158 = vmatprep.subr.bf16.mxu0 0
  %159 = vmatpush1.bf16.msra.mxu0 0
  %160 = vmatprep.subr.bf16.mxu0 0
  %161 = vmatpush1.bf16.msra.mxu0 0
  %162 = vmatprep.subr.bf16.mxu0 0
  %163 = vmatpush1.bf16.msra.mxu0 0
  %164 = vmatprep.subr.bf16.mxu0 0
  %165 = vmatpush1.bf16.msra.mxu0 0
  %166 = vmatprep.subr.bf16.mxu0 0
  %167 = vmatpush1.bf16.msra.mxu0 0
  %168 = vmatprep.subr.bf16.mxu0 0
  %169 = vmatpush1.bf16.msra.mxu0 0
  %170 = vmatprep.subr.bf16.mxu0 0
  %171 = vmatpush1.bf16.msra.mxu0 0
  %172 = vmatprep.subr.bf16.mxu0 0
  %173 = vmatpush1.bf16.msra.mxu0 0
  %174 = vmatprep.subr.bf16.mxu0 0
  %175 = vmatpush1.bf16.msra.mxu0 0
  %176 = vmatprep.mubr.bf16.mxu0 0
  %177 = vmatmul.mubr.bf16.gmra.mrb[0].mxu0 %v142
  %v178 = vpop.f32.mrb[0].mxu0
  %v179 = vadd.f32 %v114, %v178
  %v180 = vpop.f32.mrb[0].mxu0
  %v181 = vpop.f32.mrb[0].mxu0
  %v182 = vadd.f32 %v114, %v181
  %v183 = vpop.f32.mrb[0].mxu0
  %184 = vdwg.mxu0
  %v185 = vadd.f32 %v179, %v27
  %v186 = vadd.f32 %v182, %v28
  %v187 = vsel %vm53, %v185, 0.0
  %188 = vadd.xlane.f32.xlu0 %v187
  %v189 = vpop.xlane.xlu0 %188
  %v190 = vsel %vm53, %v186, 0.0
  %191 = vadd.xlane.f32.xlu0 %v190
  %v192 = vpop.xlane.xlu0 %191
  %v193 = vrcp.pop 32.0
  %v194 = vmul.f32 %v189, %v193
  %v195 = vmul.f32 %v192, %v193
  %v196 = vsub.f32 %v185, %v194
  %v197 = vsub.f32 %v186, %v195
  %v198 = vmul.f32 %v196, %v196
  %v199 = vmul.f32 %v197, %v197
  %v200 = vsel %vm53, %v198, 0.0
  %201 = vadd.xlane.f32.xlu0 %v200
  %v202 = vpop.xlane.xlu0 %201
  %v203 = vsel %vm53, %v199, 0.0
  %204 = vadd.xlane.f32.xlu0 %v203
  %v205 = vpop.xlane.xlu0 %204
  %v206 = vmul.f32 %v202, %v193
  %v207 = vmul.f32 %v205, %v193
  %v208 = vadd.f32 %v206, 1e-05
  %v209 = vadd.f32 %v207, 1e-05
  %v210 = vrsqrt.pop %v208
  %v211 = vrsqrt.pop %v209
  %v212 = vmul.f32 %v196, %v210
  %v213 = vmul.f32 %v197, %v211
  %v214 = vld [vmem:[%s5] sm:$0x1]
  %v216 = vlaneseq
  %v217 = vshrl.u32 %v216, 7
  %v218 = vsub.s32 0, %v217
  %v219 = vrot.slane %v214, %v218
  %v221 = vmul.f32 %v212, %v219
  %v222 = vmul.f32 %v213, %v219
  %v223 = vld [vmem:[%s6] sm:$0x1]
  %v225 = vlaneseq
  %v226 = vshrl.u32 %v225, 7
  %v227 = vsub.s32 0, %v226
  %v228 = vrot.slane %v223, %v227
  %v230 = vadd.f32 %v221, %v228
  %v231 = vadd.f32 %v222, %v228
  %232 = vst.msk [vmem:[%s7] sm:$0xff] %vm53, %v230
  %233 = vst.msk [vmem:[%s7 + $0x8] sm:$0xff] %vm53, %v231
  // Predicated region
  $region30: #{transformer_regressor_forward.11} parent=0 // pred_check
    _
  $region31: #{transformer_regressor_forward.11} parent=0 // pred_check_branch
    %235 = sbr.rel (0) target = $region33
  $region32: #{transformer_regressor_forward.11} parent=0 // pred_region
    _
  $region33: #{transformer_regressor_forward.11} parent=0 // pred_fallthru
    _
  // Predicated region
  $region34: #{transformer_regressor_forward.11} parent=0 // pred_check
    _
  $region35: #{transformer_regressor_forward.11} parent=0 // pred_check_branch
    %237 = sbr.rel (0) target = $region37
  $region36: #{transformer_regressor_forward.11} parent=0 // pred_region
    _
  $region37: #{transformer_regressor_forward.11} parent=0 // pred_fallthru
    _

// kernel: transformer_regressor_forward.10
$region0: #{transformer_regressor_forward.10}
  #allocation0 [shape = 'u32[]', space=smem, size = 0x4, offset = 0x4, fixed_abs, tag = 'smem constant byte address 0x4 - core index']
  #allocation1 [shape = 'u32[144,128]{1,0:T(1,128)}', space=vmem, size = 0x12000, scoped, tag = 'internal scratch']
  %s0 = inlined_call_operand.vmem [shape: f32[2,12,8,8], index: 0, kind: input, shape index: {}]
  %s1 = inlined_call_operand.vmem [shape: bf16[4,8,32], index: 1, kind: input, shape index: {}]
  %s2 = inlined_call_operand.vmem [shape: f32[1,32], index: 2, kind: input, shape index: {}]
  %s3 = inlined_call_operand.vmem [shape: f32[2,8,32], index: 3, kind: input, shape index: {}]
  %s4 = inlined_call_operand.vmem [shape: f32[1,32], index: 4, kind: input, shape index: {}]
  %s5 = inlined_call_operand.vmem [shape: f32[1,32], index: 5, kind: input, shape index: {}]
  %s6 = inlined_call_operand.vmem [shape: f32[2,8,32], index: 6, kind: output, shape index: {}]
  %s7 = sld [smem:[#allocation0]]
  $region57: #{transformer_regressor_forward.10} parent=0
    _
  %s9 = ssub.s32 1, %s7
  %s10 = scalar_select 0, %s9, %s7
  loop: start=0, step=1, limit=4
  $region2: #{transformer_regressor_forward.10} parent=0 // loop_pre_header
    _
  $region3: #{transformer_regressor_forward.10} parent=0 // loop_header
    %s12 = sphi 0, %s16
    %p13 = scmp.ge.s32.totalorder %s12, 4
    %s22 = sphi 0, %s24
    %s25 = sphi 0, %s22
    %s26 = sphi 0, %s25
    %s42 = sphi 0, %s26
    %s46 = sphi 0, %s46
    %s48 = sphi 0, %s46
    %s49 = sphi 0, %s48
    %s63 = sphi 0, %s49
    %s67 = sphi 0, %s67
    %s69 = sphi 0, %s67
    %s70 = sphi 0, %s69
    %s84 = sphi 0, %s70
    %s90 = sphi 0, %s92
    %s93 = sphi 0, %s90
    %s94 = sphi 0, %s93
    %s110 = sphi 0, %s94
    %s114 = sphi 0, %s114
    %s116 = sphi 0, %s114
    %s117 = sphi 0, %s116
    %s131 = sphi 0, %s117
    %s135 = sphi 0, %s135
    %s137 = sphi 0, %s135
    %s138 = sphi 0, %s137
    %s152 = sphi 0, %s138
    %s158 = sphi 0, %s160
    %s161 = sphi 0, %s158
    %s162 = sphi 0, %s161
    %s178 = sphi 0, %s162
  $region4: #{transformer_regressor_forward.10} parent=0 // loop_header_branch
    %15 = sbr.rel (%p13) target = $region8
  $region5: #{transformer_regressor_forward.10} parent=0 // loop_body
    %s17 = ssub.s32 %s12, 1
    %s18 = ssub.s32 %s12, 2
    %s19 = sadd.s32 %s12, 1
    %s20 = ssub.s32 %s12, %s19
    %p21 = scmp.eq.s32.totalorder %s20, 0
    %s23 = sadd.s32 %s22, 1
    %s24 = scalar_select %p21, %s22, %s23
    %p27 = pneg %p21
    %p28 = scmp.eq.s32.totalorder %s12, 1
    %p29 = por %p27, %p28
    %p30 = scmp.ne.s32.totalorder %s22, %s25
    %p31 = scmp.eq.s32.totalorder %s12, 0
    %p32 = por %p30, %p31
    %p33 = scmp.ne.s32.totalorder %s22, %s25
    %p34 = scmp.eq.s32.totalorder %s17, 1
    %p35 = por %p33, %p34
    %p36 = scmp.ne.s32.totalorder %s25, %s26
    %p37 = scmp.eq.s32.totalorder %s17, 0
    %p38 = por %p36, %p37
    %p39 = scmp.ne.s32.totalorder %s25, %s26
    %p40 = scmp.eq.s32.totalorder %s18, 1
    %p41 = por %p39, %p40
    %p43 = scmp.ne.s32.totalorder %s26, %s42
    %p44 = scmp.eq.s32.totalorder %s18, 0
    %p45 = por %p43, %p44
    %s47 = sadd.s32 %s46, 1
    %p50 = scmp.eq.s32.totalorder %s12, 1
    %p51 = scmp.ne.s32.totalorder %s46, %s48
    %p52 = scmp.eq.s32.totalorder %s12, 0
    %p53 = por %p51, %p52
    %p54 = scmp.ne.s32.totalorder %s46, %s48
    %p55 = scmp.eq.s32.totalorder %s17, 1
    %p56 = por %p54, %p55
    %p57 = scmp.ne.s32.totalorder %s48, %s49
    %p58 = scmp.eq.s32.totalorder %s17, 0
    %p59 = por %p57, %p58
    %p60 = scmp.ne.s32.totalorder %s48, %s49
    %p61 = scmp.eq.s32.totalorder %s18, 1
    %p62 = por %p60, %p61
    %p64 = scmp.ne.s32.totalorder %s49, %s63
    %p65 = scmp.eq.s32.totalorder %s18, 0
    %p66 = por %p64, %p65
    %s68 = sadd.s32 %s67, 1
    %p71 = scmp.eq.s32.totalorder %s12, 1
    %p72 = scmp.ne.s32.totalorder %s67, %s69
    %p73 = scmp.eq.s32.totalorder %s12, 0
    %p74 = por %p72, %p73
    %p75 = scmp.ne.s32.totalorder %s67, %s69
    %p76 = scmp.eq.s32.totalorder %s17, 1
    %p77 = por %p75, %p76
    %p78 = scmp.ne.s32.totalorder %s69, %s70
    %p79 = scmp.eq.s32.totalorder %s17, 0
    %p80 = por %p78, %p79
    %p81 = scmp.ne.s32.totalorder %s69, %s70
    %p82 = scmp.eq.s32.totalorder %s18, 1
    %p83 = por %p81, %p82
    %p85 = scmp.ne.s32.totalorder %s70, %s84
    %p86 = scmp.eq.s32.totalorder %s18, 0
    %p87 = por %p85, %p86
    %s88 = ssub.s32 %s12, %s19
    %p89 = scmp.eq.s32.totalorder %s88, 0
    %s91 = sadd.s32 %s90, 1
    %s92 = scalar_select %p89, %s90, %s91
    %p95 = pneg %p89
    %p96 = scmp.eq.s32.totalorder %s12, 1
    %p97 = por %p95, %p96
    %p98 = scmp.ne.s32.totalorder %s90, %s93
    %p99 = scmp.eq.s32.totalorder %s12, 0
    %p100 = por %p98, %p99
    %p101 = scmp.ne.s32.totalorder %s90, %s93
    %p102 = scmp.eq.s32.totalorder %s17, 1
    %p103 = por %p101, %p102
    %p104 = scmp.ne.s32.totalorder %s93, %s94
    %p105 = scmp.eq.s32.totalorder %s17, 0
    %p106 = por %p104, %p105
    %p107 = scmp.ne.s32.totalorder %s93, %s94
    %p108 = scmp.eq.s32.totalorder %s18, 1
    %p109 = por %p107, %p108
    %p111 = scmp.ne.s32.totalorder %s94, %s110
    %p112 = scmp.eq.s32.totalorder %s18, 0
    %p113 = por %p111, %p112
    %s115 = sadd.s32 %s114, 1
    %p118 = scmp.eq.s32.totalorder %s12, 1
    %p119 = scmp.ne.s32.totalorder %s114, %s116
    %p120 = scmp.eq.s32.totalorder %s12, 0
    %p121 = por %p119, %p120
    %p122 = scmp.ne.s32.totalorder %s114, %s116
    %p123 = scmp.eq.s32.totalorder %s17, 1
    %p124 = por %p122, %p123
    %p125 = scmp.ne.s32.totalorder %s116, %s117
    %p126 = scmp.eq.s32.totalorder %s17, 0
    %p127 = por %p125, %p126
    %p128 = scmp.ne.s32.totalorder %s116, %s117
    %p129 = scmp.eq.s32.totalorder %s18, 1
    %p130 = por %p128, %p129
    %p132 = scmp.ne.s32.totalorder %s117, %s131
    %p133 = scmp.eq.s32.totalorder %s18, 0
    %p134 = por %p132, %p133
    %s136 = sadd.s32 %s135, 1
    %p139 = scmp.eq.s32.totalorder %s12, 1
    %p140 = scmp.ne.s32.totalorder %s135, %s137
    %p141 = scmp.eq.s32.totalorder %s12, 0
    %p142 = por %p140, %p141
    %p143 = scmp.ne.s32.totalorder %s135, %s137
    %p144 = scmp.eq.s32.totalorder %s17, 1
    %p145 = por %p143, %p144
    %p146 = scmp.ne.s32.totalorder %s137, %s138
    %p147 = scmp.eq.s32.totalorder %s17, 0
    %p148 = por %p146, %p147
    %p149 = scmp.ne.s32.totalorder %s137, %s138
    %p150 = scmp.eq.s32.totalorder %s18, 1
    %p151 = por %p149, %p150
    %p153 = scmp.ne.s32.totalorder %s138, %s152
    %p154 = scmp.eq.s32.totalorder %s18, 0
    %p155 = por %p153, %p154
    %s156 = ssub.s32 %s12, %s19
    %p157 = scmp.eq.s32.totalorder %s156, 0
    %s159 = sadd.s32 %s158, 1
    %s160 = scalar_select %p157, %s158, %s159
    %p163 = pneg %p157
    %p164 = scmp.eq.s32.totalorder %s12, 1
    %p165 = por %p163, %p164
    %p166 = scmp.ne.s32.totalorder %s158, %s161
    %p167 = scmp.eq.s32.totalorder %s12, 0
    %p168 = por %p166, %p167
    %p169 = scmp.ne.s32.totalorder %s158, %s161
    %p170 = scmp.eq.s32.totalorder %s17, 1
    %p171 = por %p169, %p170
    %p172 = scmp.ne.s32.totalorder %s161, %s162
    %p173 = scmp.eq.s32.totalorder %s17, 0
    %p174 = por %p172, %p173
    %p175 = scmp.ne.s32.totalorder %s161, %s162
    %p176 = scmp.eq.s32.totalorder %s18, 1
    %p177 = por %p175, %p176
    %p179 = scmp.ne.s32.totalorder %s162, %s178
    %p180 = scmp.eq.s32.totalorder %s18, 0
    %p181 = por %p179, %p180
    %p182 = scmp.le.s32.totalorder 1, %s12
    %p183 = scmp.lt.s32.totalorder %s12, 3
    %p184 = pnand %p182, %p183
    %p185 = pneg %p184
    // Predicated region
    $region9: #{transformer_regressor_forward.10} parent=5 // pred_check
      _
    $region10: #{transformer_regressor_forward.10} parent=5 // pred_check_branch
      %187 = sbr.rel (%p184) target = $region12
    $region11: #{transformer_regressor_forward.10} parent=5 // pred_region
      %s188 = ssub.s32 %s12, 1
      // Predicated region
      $region13: #{transformer_regressor_forward.10} parent=11 // pred_check
        %p189 = pneg %p59
      $region14: #{transformer_regressor_forward.10} parent=11 // pred_check_branch
        %191 = sbr.rel (%p189) target = $region16
      $region15: #{transformer_regressor_forward.10} parent=11 // pred_region
        _
      $region16: #{transformer_regressor_forward.10} parent=11 // pred_fallthru
        _
      // Predicated region
      $region17: #{transformer_regressor_forward.10} parent=11 // pred_check
        %p192 = pneg %p80
      $region18: #{transformer_regressor_forward.10} parent=11 // pred_check_branch
        %194 = sbr.rel (%p192) target = $region20
      $region19: #{transformer_regressor_forward.10} parent=11 // pred_region
        _
      $region20: #{transformer_regressor_forward.10} parent=11 // pred_fallthru
        _
      // Predicated region
      $region21: #{transformer_regressor_forward.10} parent=11 // pred_check
        %p195 = pneg %p127
      $region22: #{transformer_regressor_forward.10} parent=11 // pred_check_branch
        %197 = sbr.rel (%p195) target = $region24
      $region23: #{transformer_regressor_forward.10} parent=11 // pred_region
        _
      $region24: #{transformer_regressor_forward.10} parent=11 // pred_fallthru
        _
      // Predicated region
      $region25: #{transformer_regressor_forward.10} parent=11 // pred_check
        %p198 = pneg %p148
      $region26: #{transformer_regressor_forward.10} parent=11 // pred_check_branch
        %200 = sbr.rel (%p198) target = $region28
      $region27: #{transformer_regressor_forward.10} parent=11 // pred_region
        _
      $region28: #{transformer_regressor_forward.10} parent=11 // pred_fallthru
        _
    $region12: #{transformer_regressor_forward.10} parent=5 // pred_fallthru
      _
    %p201 = scmp.lt.s32.totalorder %s12, 2
    // Predicated region
    $region29: #{transformer_regressor_forward.10} parent=5 // pred_check
      %p202 = pneg %p201
    $region30: #{transformer_regressor_forward.10} parent=5 // pred_check_branch
      %204 = sbr.rel (%p202) target = $region32
    $region31: #{transformer_regressor_forward.10} parent=5 // pred_region
      // Predicated region
      $region33: #{transformer_regressor_forward.10} parent=31 // pred_check
        %p205 = pneg %p32
      $region34: #{transformer_regressor_forward.10} parent=31 // pred_check_branch
        %207 = sbr.rel (%p205) target = $region36
      $region35: #{transformer_regressor_forward.10} parent=31 // pred_region
        %p208 = scmp.lt.s32.totalorder %s12, 1
        %s209 = scalar_select %p208, %s12, 1
        %s210 = smul.addr %s209, 12
        %s211 = smul.addr %s210, 8
        %s212 = scalar_lea.vmem %s0, %s211
      $region36: #{transformer_regressor_forward.10} parent=31 // pred_fallthru
        _
      // Predicated region
      $region37: #{transformer_regressor_forward.10} parent=31 // pred_check
        %p213 = pneg %p100
      $region38: #{transformer_regressor_forward.10} parent=31 // pred_check_branch
        %215 = sbr.rel (%p213) target = $region40
      $region39: #{transformer_regressor_forward.10} parent=31 // pred_region
        %p216 = scmp.lt.s32.totalorder %s12, 1
        %s217 = scalar_select %p216, %s12, 1
        %s218 = smul.addr %s217, 8
        %s219 = scalar_lea.vmem %s3, %s218
      $region40: #{transformer_regressor_forward.10} parent=31 // pred_fallthru
        _
    $region32: #{transformer_regressor_forward.10} parent=5 // pred_fallthru
      _
    %p220 = scmp.le.s32.totalorder 1, %s12
    %p221 = scmp.lt.s32.totalorder %s12, 3
    %p222 = pnand %p220, %p221
    %p223 = pneg %p222
    // Predicated region
    $region41: #{transformer_regressor_forward.10} parent=5 // pred_check
      _
    $region42: #{transformer_regressor_forward.10} parent=5 // pred_check_branch
      %225 = sbr.rel (%p222) target = $region44
    $region43: #{transformer_regressor_forward.10} parent=5 // pred_region
      %s226 = ssub.s32 %s12, 1
      %p227 = scmp.lt.s32.totalorder %s17, 1
      %s228 = scalar_select %p227, %s17, 1
      %s229 = smul.addr %s228, 12
      %s230 = smul.addr %s229, 8
      %s231 = scalar_lea.vmem %s0, %s230
      %p232 = pneg %p38
      %p233 = pneg %p35
      %p234 = pneg %p59
      %p235 = pneg %p56
      %p236 = pneg %p80
      %p237 = pneg %p77
      %p238 = scmp.lt.s32.totalorder %s17, 1
      %s239 = scalar_select %p238, %s17, 1
      %s240 = smul.addr %s239, 8
      %s241 = scalar_lea.vmem %s3, %s240
      %p242 = pneg %p106
      %p243 = pneg %p103
      %p244 = pneg %p127
      %p245 = pneg %p124
      %p246 = pneg %p148
      %p247 = pneg %p145
      %p248 = pneg %p174
      %p249 = pneg %p171
      %p250 = scmp.lt.s32.totalorder %s17, 1
      %s251 = scalar_select %p250, %s17, 1
      %s252 = smul.addr %s251, 8
      %s253 = scalar_lea.vmem %s6, %s252
      %p254 = scmp.lt.s32.totalorder %s17, 1
      %s255 = scalar_select %p254, %s17, 1
      %s256 = smul.addr %s255, 12
      %s257 = smul.addr %s256, 8
      %s258 = scalar_lea.vmem %s0, %s257
      %p259 = scmp.lt.s32.totalorder %s17, 1
      %s260 = scalar_select %p259, %s17, 1
      %s261 = smul.addr %s260, 8
      %s262 = scalar_lea.vmem %s3, %s261
      %p263 = scmp.lt.s32.totalorder %s17, 1
      %s264 = scalar_select %p263, %s17, 1
      %s265 = smul.addr %s264, 8
      %s266 = scalar_lea.vmem %s6, %s265
      %v268 = vld [vmem:[%s258] sm:$0xff]
      %v269 = vld [vmem:[%s258 + $0x8] sm:$0xff]
      %v270 = vld [vmem:[%s258 + $0x10] sm:$0xff]
      %v271 = vld [vmem:[%s258 + $0x18] sm:$0xff]
      %v272 = vld [vmem:[%s258 + $0x20] sm:$0xff]
      %v273 = vld [vmem:[%s258 + $0x28] sm:$0xff]
      %v274 = vld [vmem:[%s258 + $0x30] sm:$0xff]
      %v275 = vld [vmem:[%s258 + $0x38] sm:$0xff]
      %v276 = vld [vmem:[%s258 + $0x40] sm:$0xff]
      %v277 = vld [vmem:[%s258 + $0x48] sm:$0xff]
      %v278 = vld [vmem:[%s258 + $0x50] sm:$0xff]
      %v279 = vld [vmem:[%s258 + $0x58] sm:$0xff]
      %v280 = vpack.c.bf16 %v268, %v268
      %v281 = vpack.c.bf16 %v269, %v269
      %v282 = vpack.c.bf16 %v270, %v270
      %v283 = vpack.c.bf16 %v271, %v271
      %v284 = vpack.c.bf16 %v272, %v272
      %v285 = vpack.c.bf16 %v273, %v273
      %v286 = vpack.c.bf16 %v274, %v274
      %v287 = vpack.c.bf16 %v275, %v275
      %v288 = vpack.c.bf16 %v276, %v276
      %v289 = vpack.c.bf16 %v277, %v277
      %v290 = vpack.c.bf16 %v278, %v278
      %v291 = vpack.c.bf16 %v279, %v279
      %vm292 = vcmask 64512
      %v294 = vsel %vm292, %v280, 0
      %v297 = vsel %vm292, %v284, 0
      %299 = vmatprep.subr.bf16.mxu0 0
      %300 = vmatpush1.bf16.xpose.msra.mxu0 %v297
      %301 = vmatprep.subr.bf16.mxu0 0
      %302 = vmatpush1.bf16.xpose.msra.mxu0 0
      %303 = vmatprep.subr.bf16.mxu0 0
      %304 = vmatpush1.bf16.xpose.msra.mxu0 0
      %305 = vmatprep.subr.bf16.mxu0 0
      %306 = vmatpush1.bf16.xpose.msra.mxu0 0
      %307 = vmatprep.subr.bf16.mxu0 0
      %308 = vmatpush1.bf16.xpose.msra.mxu0 0
      %309 = vmatprep.subr.bf16.mxu0 0
      %310 = vmatpush1.bf16.xpose.msra.mxu0 0
      %311 = vmatprep.subr.bf16.mxu0 0
      %312 = vmatpush1.bf16.xpose.msra.mxu0 0
      %313 = vmatprep.subr.bf16.mxu0 0
      %314 = vmatpush1.bf16.xpose.msra.mxu0 0
      %315 = vmatprep.subr.bf16.mxu0 0
      %316 = vmatpush1.bf16.xpose.msra.mxu0 0
      %317 = vmatprep.subr.bf16.mxu0 0
      %318 = vmatpush1.bf16.xpose.msra.mxu0 0
      %319 = vmatprep.subr.bf16.mxu0 0
      %320 = vmatpush1.bf16.xpose.msra.mxu0 0
      %321 = vmatprep.subr.bf16.mxu0 0
      %322 = vmatpush1.bf16.xpose.msra.mxu0 0
      %323 = vmatprep.subr.bf16.mxu0 0
      %324 = vmatpush1.bf16.xpose.msra.mxu0 0
      %325 = vmatprep.subr.bf16.mxu0 0
      %326 = vmatpush1.bf16.xpose.msra.mxu0 0
      %327 = vmatprep.subr.bf16.mxu0 0
      %328 = vmatpush1.bf16.xpose.msra.mxu0 0
      %329 = vmatprep.subr.bf16.mxu0 0
      %330 = vmatpush1.bf16.xpose.msra.mxu0 0
      %331 = vmatprep.mubr.bf16.mxu0 0
      %332 = vmatmul.mubr.bf16.gmra.mrb[0].mxu0 %v294
      %v333 = vpop.f32.mrb[0].mxu0
      %v334 = vadd.f32 0.0, %v333
      %v335 = vpop.f32.mrb[0].mxu0
      %v336 = vpop.f32.mrb[0].mxu0
      %v337 = vpop.f32.mrb[0].mxu0
      %338 = vdwg.mxu0
      %v340 = vsel %vm292, %v281, 0
      %v343 = vsel %vm292, %v285, 0
      %345 = vmatprep.subr.bf16.mxu0 0
      %346 = vmatpush1.bf16.xpose.msra.mxu0 %v343
      %347 = vmatprep.subr.bf16.mxu0 0
      %348 = vmatpush1.bf16.xpose.msra.mxu0 0
      %349 = vmatprep.subr.bf16.mxu0 0
      %350 = vmatpush1.bf16.xpose.msra.mxu0 0
      %351 = vmatprep.subr.bf16.mxu0 0
      %352 = vmatpush1.bf16.xpose.msra.mxu0 0
      %353 = vmatprep.subr.bf16.mxu0 0
      %354 = vmatpush1.bf16.xpose.msra.mxu0 0
      %355 = vmatprep.subr.bf16.mxu0 0
      %356 = vmatpush1.bf16.xpose.msra.mxu0 0
      %357 = vmatprep.subr.bf16.mxu0 0
      %358 = vmatpush1.bf16.xpose.msra.mxu0 0
      %359 = vmatprep.subr.bf16.mxu0 0
      %360 = vmatpush1.bf16.xpose.msra.mxu0 0
      %361 = vmatprep.subr.bf16.mxu0 0
      %362 = vmatpush1.bf16.xpose.msra.mxu0 0
      %363 = vmatprep.subr.bf16.mxu0 0
      %364 = vmatpush1.bf16.xpose.msra.mxu0 0
      %365 = vmatprep.subr.bf16.mxu0 0
      %366 = vmatpush1.bf16.xpose.msra.mxu0 0
      %367 = vmatprep.subr.bf16.mxu0 0
      %368 = vmatpush1.bf16.xpose.msra.mxu0 0
      %369 = vmatprep.subr.bf16.mxu0 0
      %370 = vmatpush1.bf16.xpose.msra.mxu0 0
      %371 = vmatprep.subr.bf16.mxu0 0
      %372 = vmatpush1.bf16.xpose.msra.mxu0 0
      %373 = vmatprep.subr.bf16.mxu0 0
      %374 = vmatpush1.bf16.xpose.msra.mxu0 0
      %375 = vmatprep.subr.bf16.mxu0 0
      %376 = vmatpush1.bf16.xpose.msra.mxu0 0
      %377 = vmatprep.mubr.bf16.mxu0 0
      %378 = vmatmul.mubr.bf16.gmra.mrb[0].mxu0 %v340
      %v379 = vpop.f32.mrb[0].mxu0
      %v380 = vadd.f32 0.0, %v379
      %v381 = vpop.f32.mrb[0].mxu0
      %v382 = vpop.f32.mrb[0].mxu0
      %v383 = vpop.f32.mrb[0].mxu0
      %384 = vdwg.mxu0
      %v386 = vsel %vm292, %v282, 0
      %v389 = vsel %vm292, %v286, 0
      %391 = vmatprep.subr.bf16.mxu0 0
      %392 = vmatpush1.bf16.xpose.msra.mxu0 %v389
      %393 = vmatprep.subr.bf16.mxu0 0
      %394 = vmatpush1.bf16.xpose.msra.mxu0 0
      %395 = vmatprep.subr.bf16.mxu0 0
      %396 = vmatpush1.bf16.xpose.msra.mxu0 0
      %397 = vmatprep.subr.bf16.mxu0 0
      %398 = vmatpush1.bf16.xpose.msra.mxu0 0
      %399 = vmatprep.subr.bf16.mxu0 0
      %400 = vmatpush1.bf16.xpose.msra.mxu0 0
      %401 = vmatprep.subr.bf16.mxu0 0
      %402 = vmatpush1.bf16.xpose.msra.mxu0 0
      %403 = vmatprep.subr.bf16.mxu0 0
      %404 = vmatpush1.bf16.xpose.msra.mxu0 0
      %405 = vmatprep.subr.bf16.mxu0 0
      %406 = vmatpush1.bf16.xpose.msra.mxu0 0
      %407 = vmatprep.subr.bf16.mxu0 0
      %408 = vmatpush1.bf16.xpose.msra.mxu0 0
      %409 = vmatprep.subr.bf16.mxu0 0
      %410 = vmatpush1.bf16.xpose.msra.mxu0 0
      %411 = vmatprep.subr.bf16.mxu0 0
      %412 = vmatpush1.bf16.xpose.msra.mxu0 0
      %413 = vmatprep.subr.bf16.mxu0 0
      %414 = vmatpush1.bf16.xpose.msra.mxu0 0
      %415 = vmatprep.subr.bf16.mxu0 0
      %416 = vmatpush1.bf16.xpose.msra.mxu0 0
      %417 = vmatprep.subr.bf16.mxu0 0
      %418 = vmatpush1.bf16.xpose.msra.mxu0 0
      %419 = vmatprep.subr.bf16.mxu0 0
      %420 = vmatpush1.bf16.xpose.msra.mxu0 0
      %421 = vmatprep.subr.bf16.mxu0 0
      %422 = vmatpush1.bf16.xpose.msra.mxu0 0
      %423 = vmatprep.mubr.bf16.mxu0 0
      %424 = vmatmul.mubr.bf16.gmra.mrb[0].mxu0 %v386
      %v425 = vpop.f32.mrb[0].mxu0
      %v426 = vadd.f32 0.0, %v425
      %v427 = vpop.f32.mrb[0].mxu0
      %v428 = vpop.f32.mrb[0].mxu0
      %v429 = vpop.f32.mrb[0].mxu0
      %430 = vdwg.mxu0
      %v432 = vsel %vm292, %v283, 0
      %v435 = vsel %vm292, %v287, 0
      %437 = vmatprep.subr.bf16.mxu0 0
      %438 = vmatpush1.bf16.xpose.msra.mxu0 %v435
      %439 = vmatprep.subr.bf16.mxu0 0
      %440 = vmatpush1.bf16.xpose.msra.mxu0 0
      %441 = vmatprep.subr.bf16.mxu0 0
      %442 = vmatpush1.bf16.xpose.msra.mxu0 0
      %443 = vmatprep.subr.bf16.mxu0 0
      %444 = vmatpush1.bf16.xpose.msra.mxu0 0
      %445 = vmatprep.subr.bf16.mxu0 0
      %446 = vmatpush1.bf16.xpose.msra.mxu0 0
      %447 = vmatprep.subr.bf16.mxu0 0
      %448 = vmatpush1.bf16.xpose.msra.mxu0 0
      %449 = vmatprep.subr.bf16.mxu0 0
      %450 = vmatpush1.bf16.xpose.msra.mxu0 0
      %451 = vmatprep.subr.bf16.mxu0 0
      %452 = vmatpush1.bf16.xpose.msra.mxu0 0
      %453 = vmatprep.subr.bf16.mxu0 0
      %454 = vmatpush1.bf16.xpose.msra.mxu0 0
      %455 = vmatprep.subr.bf16.mxu0 0
      %456 = vmatpush1.bf16.xpose.msra.mxu0 0
      %457 = vmatprep.subr.bf16.mxu0 0
      %458 = vmatpush1.bf16.xpose.msra.mxu0 0
      %459 = vmatprep.subr.bf16.mxu0 0
      %460 = vmatpush1.bf16.xpose.msra.mxu0 0
      %461 = vmatprep.subr.bf16.mxu0 0
      %462 = vmatpush1.bf16.xpose.msra.mxu0 0
      %463 = vmatprep.subr.bf16.mxu0 0
      %464 = vmatpush1.bf16.xpose.msra.mxu0 0
      %465 = vmatprep.subr.bf16.mxu0 0
      %466 = vmatpush1.bf16.xpose.msra.mxu0 0
      %467 = vmatprep.subr.bf16.mxu0 0
      %468 = vmatpush1.bf16.xpose.msra.mxu0 0
      %469 = vmatprep.mubr.bf16.mxu0 0
      %470 = vmatmul.mubr.bf16.gmra.mrb[0].mxu0 %v432
      %v471 = vpop.f32.mrb[0].mxu0
      %v472 = vadd.f32 0.0, %v471
      %v473 = vpop.f32.mrb[0].mxu0
      %v474 = vpop.f32.mrb[0].mxu0
      %v475 = vpop.f32.mrb[0].mxu0
      %476 = vdwg.mxu0
      %v477 = vmul.f32 %v334, 0.35355338
      %v478 = vmul.f32 %v380, 0.35355338
      %v479 = vmul.f32 %v426, 0.35355338
      %v480 = vmul.f32 %v472, 0.35355338
      %v481 = vsel %vm292, %v477, -inf
      %482 = vmax.xlane.f32.xlu0 %v481
      %v483 = vpop.xlane.xlu0 %482
      %v484 = vsel %vm292, %v478, -inf
      %485 = vmax.xlane.f32.xlu0 %v484
      %v486 = vpop.xlane.xlu0 %485
      %v487 = vsel %vm292, %v479, -inf
      %488 = vmax.xlane.f32.xlu0 %v487
      %v489 = vpop.xlane.xlu0 %488
      %v490 = vsel %vm292, %v480, -inf
      %491 = vmax.xlane.f32.xlu0 %v490
      %v492 = vpop.xlane.xlu0 %491
      %v493 = vsub.f32 %v477, %v483
      %v494 = vsub.f32 %v478, %v486
      %v495 = vsub.f32 %v479, %v489
      %v496 = vsub.f32 %v480, %v492
      %v497 = vmul.f32 %v493, 1.442695
      %v498 = vpow.pop %v497
      %v499 = vmul.f32 %v494, 1.442695
      %v500 = vpow.pop %v499
      %v501 = vmul.f32 %v495, 1.442695
      %v502 = vpow.pop %v501
      %v503 = vmul.f32 %v496, 1.442695
      %v504 = vpow.pop %v503
      %v505 = vsel %vm292, %v498, 0.0
      %506 = vadd.xlane.f32.xlu0 %v505
      %v507 = vpop.xlane.xlu0 %506
      %v508 = vsel %vm292, %v500, 0.0
      %509 = vadd.xlane.f32.xlu0 %v508
      %v510 = vpop.xlane.xlu0 %509
      %v511 = vsel %vm292, %v502, 0.0
      %512 = vadd.xlane.f32.xlu0 %v511
      %v513 = vpop.xlane.xlu0 %512
      %v514 = vsel %vm292, %v504, 0.0
      %515 = vadd.xlane.f32.xlu0 %v514
      %v516 = vpop.xlane.xlu0 %515
      %v517 = vrcp.pop %v507
      %v518 = vrcp.pop %v510
      %v519 = vrcp.pop %v513
      %v520 = vrcp.pop %v516
      %v521 = vmul.f32 %v498, %v517
      %v522 = vmul.f32 %v500, %v518
      %v523 = vmul.f32 %v502, %v519
      %v524 = vmul.f32 %v504, %v520
      %v525 = vpack.c.bf16 %v521, %v521
      %v526 = vpack.c.bf16 %v522, %v522
      %v527 = vpack.c.bf16 %v523, %v523
      %v528 = vpack.c.bf16 %v524, %v524
      %v530 = vsel %vm292, %v525, 0
      %vm532 = vcmask 1043456
      %v534 = vsel %vm532, %v288, 0
      %536 = vmatprep.subr.bf16.mxu0 0
      %537 = vmatpush1.bf16.msra.mxu0 %v534
      %538 = vmatprep.subr.bf16.mxu0 0
      %539 = vmatpush1.bf16.msra.mxu0 0
      %540 = vmatprep.subr.bf16.mxu0 0
      %541 = vmatpush1.bf16.msra.mxu0 0
      %542 = vmatprep.subr.bf16.mxu0 0
      %543 = vmatpush1.bf16.msra.mxu0 0
      %544 = vmatprep.subr.bf16.mxu0 0
      %545 = vmatpush1.bf16.msra.mxu0 0
      %546 = vmatprep.subr.bf16.mxu0 0
      %547 = vmatpush1.bf16.msra.mxu0 0
      %548 = vmatprep.subr.bf16.mxu0 0
      %549 = vmatpush1.bf16.msra.mxu0 0
      %550 = vmatprep.subr.bf16.mxu0 0
      %551 = vmatpush1.bf16.msra.mxu0 0
      %552 = vmatprep.subr.bf16.mxu0 0
      %553 = vmatpush1.bf16.msra.mxu0 0
      %554 = vmatprep.subr.bf16.mxu0 0
      %555 = vmatpush1.bf16.msra.mxu0 0
      %556 = vmatprep.subr.bf16.mxu0 0
      %557 = vmatpush1.bf16.msra.mxu0 0
      %558 = vmatprep.subr.bf16.mxu0 0
      %559 = vmatpush1.bf16.msra.mxu0 0
      %560 = vmatprep.subr.bf16.mxu0 0
      %561 = vmatpush1.bf16.msra.mxu0 0
      %562 = vmatprep.subr.bf16.mxu0 0
      %563 = vmatpush1.bf16.msra.mxu0 0
      %564 = vmatprep.subr.bf16.mxu0 0
      %565 = vmatpush1.bf16.msra.mxu0 0
      %566 = vmatprep.subr.bf16.mxu0 0
      %567 = vmatpush1.bf16.msra.mxu0 0
      %568 = vmatprep.mubr.bf16.mxu0 0
      %569 = vmatmul.mubr.bf16.gmra.mrb[0].mxu0 %v530
      %v570 = vpop.f32.mrb[0].mxu0
      %v571 = vadd.f32 0.0, %v570
      %v572 = vpop.f32.mrb[0].mxu0
      %v573 = vpop.f32.mrb[0].mxu0
      %v574 = vpop.f32.mrb[0].mxu0
      %575 = vdwg.mxu0
      %v577 = vsel %vm292, %v526, 0
      %v580 = vsel %vm532, %v289, 0
      %582 = vmatprep.subr.bf16.mxu0 0
      %583 = vmatpush1.bf16.msra.mxu0 %v580
      %584 = vmatprep.subr.bf16.mxu0 0
      %585 = vmatpush1.bf16.msra.mxu0 0
      %586 = vmatprep.subr.bf16.mxu0 0
      %587 = vmatpush1.bf16.msra.mxu0 0
      %588 = vmatprep.subr.bf16.mxu0 0
      %589 = vmatpush1.bf16.msra.mxu0 0
      %590 = vmatprep.subr.bf16.mxu0 0
      %591 = vmatpush1.bf16.msra.mxu0 0
      %592 = vmatprep.subr.bf16.mxu0 0
      %593 = vmatpush1.bf16.msra.mxu0 0
      %594 = vmatprep.subr.bf16.mxu0 0
      %595 = vmatpush1.bf16.msra.mxu0 0
      %596 = vmatprep.subr.bf16.mxu0 0
      %597 = vmatpush1.bf16.msra.mxu0 0
      %598 = vmatprep.subr.bf16.mxu0 0
      %599 = vmatpush1.bf16.msra.mxu0 0
      %600 = vmatprep.subr.bf16.mxu0 0
      %601 = vmatpush1.bf16.msra.mxu0 0
      %602 = vmatprep.subr.bf16.mxu0 0
      %603 = vmatpush1.bf16.msra.mxu0 0
      %604 = vmatprep.subr.bf16.mxu0 0
      %605 = vmatpush1.bf16.msra.mxu0 0
      %606 = vmatprep.subr.bf16.mxu0 0
      %607 = vmatpush1.bf16.msra.mxu0 0
      %608 = vmatprep.subr.bf16.mxu0 0
      %609 = vmatpush1.bf16.msra.mxu0 0
      %610 = vmatprep.subr.bf16.mxu0 0
      %611 = vmatpush1.bf16.msra.mxu0 0
      %612 = vmatprep.subr.bf16.mxu0 0
      %613 = vmatpush1.bf16.msra.mxu0 0
      %614 = vmatprep.mubr.bf16.mxu0 0
      %615 = vmatmul.mubr.bf16.gmra.mrb[0].mxu0 %v577
      %v616 = vpop.f32.mrb[0].mxu0
      %v617 = vadd.f32 0.0, %v616
      %v618 = vpop.f32.mrb[0].mxu0
      %v619 = vpop.f32.mrb[0].mxu0
      %v620 = vpop.f32.mrb[0].mxu0
      %621 = vdwg.mxu0
      %v623 = vsel %vm292, %v527, 0
      %v626 = vsel %vm532, %v290, 0
      %628 = vmatprep.subr.bf16.mxu0 0
      %629 = vmatpush1.bf16.msra.mxu0 %v626
      %630 = vmatprep.subr.bf16.mxu0 0
      %631 = vmatpush1.bf16.msra.mxu0 0
      %632 = vmatprep.subr.bf16.mxu0 0
      %633 = vmatpush1.bf16.msra.mxu0 0
      %634 = vmatprep.subr.bf16.mxu0 0
      %635 = vmatpush1.bf16.msra.mxu0 0
      %636 = vmatprep.subr.bf16.mxu0 0
      %637 = vmatpush1.bf16.msra.mxu0 0
      %638 = vmatprep.subr.bf16.mxu0 0
      %639 = vmatpush1.bf16.msra.mxu0 0
      %640 = vmatprep.subr.bf16.mxu0 0
      %641 = vmatpush1.bf16.msra.mxu0 0
      %642 = vmatprep.subr.bf16.mxu0 0
      %643 = vmatpush1.bf16.msra.mxu0 0
      %644 = vmatprep.subr.bf16.mxu0 0
      %645 = vmatpush1.bf16.msra.mxu0 0
      %646 = vmatprep.subr.bf16.mxu0 0
      %647 = vmatpush1.bf16.msra.mxu0 0
      %648 = vmatprep.subr.bf16.mxu0 0
      %649 = vmatpush1.bf16.msra.mxu0 0
      %650 = vmatprep.subr.bf16.mxu0 0
      %651 = vmatpush1.bf16.msra.mxu0 0
      %652 = vmatprep.subr.bf16.mxu0 0
      %653 = vmatpush1.bf16.msra.mxu0 0
      %654 = vmatprep.subr.bf16.mxu0 0
      %655 = vmatpush1.bf16.msra.mxu0 0
      %656 = vmatprep.subr.bf16.mxu0 0
      %657 = vmatpush1.bf16.msra.mxu0 0
      %658 = vmatprep.subr.bf16.mxu0 0
      %659 = vmatpush1.bf16.msra.mxu0 0
      %660 = vmatprep.mubr.bf16.mxu0 0
      %661 = vmatmul.mubr.bf16.gmra.mrb[0].mxu0 %v623
      %v662 = vpop.f32.mrb[0].mxu0
      %v663 = vadd.f32 0.0, %v662
      %v664 = vpop.f32.mrb[0].mxu0
      %v665 = vpop.f32.mrb[0].mxu0
      %v666 = vpop.f32.mrb[0].mxu0
      %667 = vdwg.mxu0
      %v669 = vsel %vm292, %v528, 0
      %v672 = vsel %vm532, %v291, 0
      %674 = vmatprep.subr.bf16.mxu0 0
      %675 = vmatpush1.bf16.msra.mxu0 %v672
      %676 = vmatprep.subr.bf16.mxu0 0
      %677 = vmatpush1.bf16.msra.mxu0 0
      %678 = vmatprep.subr.bf16.mxu0 0
      %679 = vmatpush1.bf16.msra.mxu0 0
      %680 = vmatprep.subr.bf16.mxu0 0
      %681 = vmatpush1.bf16.msra.mxu0 0
      %682 = vmatprep.subr.bf16.mxu0 0
      %683 = vmatpush1.bf16.msra.mxu0 0
      %684 = vmatprep.subr.bf16.mxu0 0
      %685 = vmatpush1.bf16.msra.mxu0 0
      %686 = vmatprep.subr.bf16.mxu0 0
      %687 = vmatpush1.bf16.msra.mxu0 0
      %688 = vmatprep.subr.bf16.mxu0 0
      %689 = vmatpush1.bf16.msra.mxu0 0
      %690 = vmatprep.subr.bf16.mxu0 0
      %691 = vmatpush1.bf16.msra.mxu0 0
      %692 = vmatprep.subr.bf16.mxu0 0
      %693 = vmatpush1.bf16.msra.mxu0 0
      %694 = vmatprep.subr.bf16.mxu0 0
      %695 = vmatpush1.bf16.msra.mxu0 0
      %696 = vmatprep.subr.bf16.mxu0 0
      %697 = vmatpush1.bf16.msra.mxu0 0
      %698 = vmatprep.subr.bf16.mxu0 0
      %699 = vmatpush1.bf16.msra.mxu0 0
      %700 = vmatprep.subr.bf16.mxu0 0
      %701 = vmatpush1.bf16.msra.mxu0 0
      %702 = vmatprep.subr.bf16.mxu0 0
      %703 = vmatpush1.bf16.msra.mxu0 0
      %704 = vmatprep.subr.bf16.mxu0 0
      %705 = vmatpush1.bf16.msra.mxu0 0
      %706 = vmatprep.mubr.bf16.mxu0 0
      %707 = vmatmul.mubr.bf16.gmra.mrb[0].mxu0 %v669
      %v708 = vpop.f32.mrb[0].mxu0
      %v709 = vadd.f32 0.0, %v708
      %v710 = vpop.f32.mrb[0].mxu0
      %v711 = vpop.f32.mrb[0].mxu0
      %v712 = vpop.f32.mrb[0].mxu0
      %713 = vdwg.mxu0
      %v714 = vpack.c.bf16 %v571, %v571
      %v715 = vpack.c.bf16 %v617, %v617
      %v716 = vpack.c.bf16 %v663, %v663
      %v717 = vpack.c.bf16 %v709, %v709
      %v718 = vld [vmem:[%s1] sm:$0xf]
      %v719 = vld [vmem:[%s1 + $0x4] sm:$0xf]
      %v720 = vld [vmem:[%s1 + $0x8] sm:$0xf]
      %v721 = vld [vmem:[%s1 + $0xc] sm:$0xf]
      %v723 = vsel %vm292, %v714, 0
      %v726 = vsel %vm532, %v718, 0
      %728 = vmatprep.subr.bf16.mxu0 0
      %729 = vmatpush1.bf16.msra.mxu0 %v726
      %730 = vmatprep.subr.bf16.mxu0 0
      %731 = vmatpush1.bf16.msra.mxu0 0
      %732 = vmatprep.subr.bf16.mxu0 0
      %733 = vmatpush1.bf16.msra.mxu0 0
      %734 = vmatprep.subr.bf16.mxu0 0
      %735 = vmatpush1.bf16.msra.mxu0 0
      %736 = vmatprep.subr.bf16.mxu0 0
      %737 = vmatpush1.bf16.msra.mxu0 0
      %738 = vmatprep.subr.bf16.mxu0 0
      %739 = vmatpush1.bf16.msra.mxu0 0
      %740 = vmatprep.subr.bf16.mxu0 0
      %741 = vmatpush1.bf16.msra.mxu0 0
      %742 = vmatprep.subr.bf16.mxu0 0
      %743 = vmatpush1.bf16.msra.mxu0 0
      %744 = vmatprep.subr.bf16.mxu0 0
      %745 = vmatpush1.bf16.msra.mxu0 0
      %746 = vmatprep.subr.bf16.mxu0 0
      %747 = vmatpush1.bf16.msra.mxu0 0
      %748 = vmatprep.subr.bf16.mxu0 0
      %749 = vmatpush1.bf16.msra.mxu0 0
      %750 = vmatprep.subr.bf16.mxu0 0
      %751 = vmatpush1.bf16.msra.mxu0 0
      %752 = vmatprep.subr.bf16.mxu0 0
      %753 = vmatpush1.bf16.msra.mxu0 0
      %754 = vmatprep.subr.bf16.mxu0 0
      %755 = vmatpush1.bf16.msra.mxu0 0
      %756 = vmatprep.subr.bf16.mxu0 0
      %757 = vmatpush1.bf16.msra.mxu0 0
      %758 = vmatprep.subr.bf16.mxu0 0
      %759 = vmatpush1.bf16.msra.mxu0 0
      %760 = vmatprep.mubr.bf16.mxu0 0
      %761 = vmatmul.mubr.bf16.gmra.mrb[0].mxu0 %v723
      %v762 = vpop.f32.mrb[0].mxu0
      %v763 = vadd.f32 0.0, %v762
      %v764 = vpop.f32.mrb[0].mxu0
      %v765 = vpop.f32.mrb[0].mxu0
      %v766 = vpop.f32.mrb[0].mxu0
      %767 = vdwg.mxu0
      %v769 = vsel %vm292, %v715, 0
      %v772 = vsel %vm532, %v719, 0
      %774 = vmatprep.subr.bf16.mxu0 0
      %775 = vmatpush1.bf16.msra.mxu0 %v772
      %776 = vmatprep.subr.bf16.mxu0 0
      %777 = vmatpush1.bf16.msra.mxu0 0
      %778 = vmatprep.subr.bf16.mxu0 0
      %779 = vmatpush1.bf16.msra.mxu0 0
      %780 = vmatprep.subr.bf16.mxu0 0
      %781 = vmatpush1.bf16.msra.mxu0 0
      %782 = vmatprep.subr.bf16.mxu0 0
      %783 = vmatpush1.bf16.msra.mxu0 0
      %784 = vmatprep.subr.bf16.mxu0 0
      %785 = vmatpush1.bf16.msra.mxu0 0
      %786 = vmatprep.subr.bf16.mxu0 0
      %787 = vmatpush1.bf16.msra.mxu0 0
      %788 = vmatprep.subr.bf16.mxu0 0
      %789 = vmatpush1.bf16.msra.mxu0 0
      %790 = vmatprep.subr.bf16.mxu0 0
      %791 = vmatpush1.bf16.msra.mxu0 0
      %792 = vmatprep.subr.bf16.mxu0 0
      %793 = vmatpush1.bf16.msra.mxu0 0
      %794 = vmatprep.subr.bf16.mxu0 0
      %795 = vmatpush1.bf16.msra.mxu0 0
      %796 = vmatprep.subr.bf16.mxu0 0
      %797 = vmatpush1.bf16.msra.mxu0 0
      %798 = vmatprep.subr.bf16.mxu0 0
      %799 = vmatpush1.bf16.msra.mxu0 0
      %800 = vmatprep.subr.bf16.mxu0 0
      %801 = vmatpush1.bf16.msra.mxu0 0
      %802 = vmatprep.subr.bf16.mxu0 0
      %803 = vmatpush1.bf16.msra.mxu0 0
      %804 = vmatprep.subr.bf16.mxu0 0
      %805 = vmatpush1.bf16.msra.mxu0 0
      %806 = vmatprep.mubr.bf16.mxu0 0
      %807 = vmatmul.mubr.bf16.gmra.mrb[0].mxu0 %v769
      %v808 = vpop.f32.mrb[0].mxu0
      %v809 = vadd.f32 0.0, %v808
      %v810 = vpop.f32.mrb[0].mxu0
      %v811 = vpop.f32.mrb[0].mxu0
      %v812 = vpop.f32.mrb[0].mxu0
      %813 = vdwg.mxu0
      %v815 = vsel %vm292, %v716, 0
      %v818 = vsel %vm532, %v720, 0
      %820 = vmatprep.subr.bf16.mxu0 0
      %821 = vmatpush1.bf16.msra.mxu0 %v818
      %822 = vmatprep.subr.bf16.mxu0 0
      %823 = vmatpush1.bf16.msra.mxu0 0
      %824 = vmatprep.subr.bf16.mxu0 0
      %825 = vmatpush1.bf16.msra.mxu0 0
      %826 = vmatprep.subr.bf16.mxu0 0
      %827 = vmatpush1.bf16.msra.mxu0 0
      %828 = vmatprep.subr.bf16.mxu0 0
      %829 = vmatpush1.bf16.msra.mxu0 0
      %830 = vmatprep.subr.bf16.mxu0 0
      %831 = vmatpush1.bf16.msra.mxu0 0
      %832 = vmatprep.subr.bf16.mxu0 0
      %833 = vmatpush1.bf16.msra.mxu0 0
      %834 = vmatprep.subr.bf16.mxu0 0
      %835 = vmatpush1.bf16.msra.mxu0 0
      %836 = vmatprep.subr.bf16.mxu0 0
      %837 = vmatpush1.bf16.msra.mxu0 0
      %838 = vmatprep.subr.bf16.mxu0 0
      %839 = vmatpush1.bf16.msra.mxu0 0
      %840 = vmatprep.subr.bf16.mxu0 0
      %841 = vmatpush1.bf16.msra.mxu0 0
      %842 = vmatprep.subr.bf16.mxu0 0
      %843 = vmatpush1.bf16.msra.mxu0 0
      %844 = vmatprep.subr.bf16.mxu0 0
      %845 = vmatpush1.bf16.msra.mxu0 0
      %846 = vmatprep.subr.bf16.mxu0 0
      %847 = vmatpush1.bf16.msra.mxu0 0
      %848 = vmatprep.subr.bf16.mxu0 0
      %849 = vmatpush1.bf16.msra.mxu0 0
      %850 = vmatprep.subr.bf16.mxu0 0
      %851 = vmatpush1.bf16.msra.mxu0 0
      %852 = vmatprep.mubr.bf16.mxu0 0
      %853 = vmatmul.mubr.bf16.gmra.mrb[0].mxu0 %v815
      %v854 = vpop.f32.mrb[0].mxu0
      %v855 = vadd.f32 0.0, %v854
      %v856 = vpop.f32.mrb[0].mxu0
      %v857 = vpop.f32.mrb[0].mxu0
      %v858 = vpop.f32.mrb[0].mxu0
      %859 = vdwg.mxu0
      %v861 = vsel %vm292, %v717, 0
      %v864 = vsel %vm532, %v721, 0
      %866 = vmatprep.subr.bf16.mxu0 0
      %867 = vmatpush1.bf16.msra.mxu0 %v864
      %868 = vmatprep.subr.bf16.mxu0 0
      %869 = vmatpush1.bf16.msra.mxu0 0
      %870 = vmatprep.subr.bf16.mxu0 0
      %871 = vmatpush1.bf16.msra.mxu0 0
      %872 = vmatprep.subr.bf16.mxu0 0
      %873 = vmatpush1.bf16.msra.mxu0 0
      %874 = vmatprep.subr.bf16.mxu0 0
      %875 = vmatpush1.bf16.msra.mxu0 0
      %876 = vmatprep.subr.bf16.mxu0 0
      %877 = vmatpush1.bf16.msra.mxu0 0
      %878 = vmatprep.subr.bf16.mxu0 0
      %879 = vmatpush1.bf16.msra.mxu0 0
      %880 = vmatprep.subr.bf16.mxu0 0
      %881 = vmatpush1.bf16.msra.mxu0 0
      %882 = vmatprep.subr.bf16.mxu0 0
      %883 = vmatpush1.bf16.msra.mxu0 0
      %884 = vmatprep.subr.bf16.mxu0 0
      %885 = vmatpush1.bf16.msra.mxu0 0
      %886 = vmatprep.subr.bf16.mxu0 0
      %887 = vmatpush1.bf16.msra.mxu0 0
      %888 = vmatprep.subr.bf16.mxu0 0
      %889 = vmatpush1.bf16.msra.mxu0 0
      %890 = vmatprep.subr.bf16.mxu0 0
      %891 = vmatpush1.bf16.msra.mxu0 0
      %892 = vmatprep.subr.bf16.mxu0 0
      %893 = vmatpush1.bf16.msra.mxu0 0
      %894 = vmatprep.subr.bf16.mxu0 0
      %895 = vmatpush1.bf16.msra.mxu0 0
      %896 = vmatprep.subr.bf16.mxu0 0
      %897 = vmatpush1.bf16.msra.mxu0 0
      %898 = vmatprep.mubr.bf16.mxu0 0
      %899 = vmatmul.mubr.bf16.gmra.mrb[0].mxu0 %v861
      %v900 = vpop.f32.mrb[0].mxu0
      %v901 = vadd.f32 0.0, %v900
      %v902 = vpop.f32.mrb[0].mxu0
      %v903 = vpop.f32.mrb[0].mxu0
      %v904 = vpop.f32.mrb[0].mxu0
      %905 = vdwg.mxu0
      %vm906 = vcmask 261120
      %v907 = vsel %vm906, %v763, 0.0
      %v908 = vsel %vm906, %v809, 0.0
      %v909 = vadd.f32 %v907, %v908
      %v910 = vsel %vm906, %v855, 0.0
      %v911 = vadd.f32 %v909, %v910
      %v912 = vsel %vm906, %v901, 0.0
      %v913 = vadd.f32 %v911, %v912
      %v914 = vld [vmem:[%s2] sm:$0x1]
      %v916 = vlaneseq
      %v917 = vshrl.u32 %v916, 7
      %v918 = vsub.s32 0, %v917
      %v919 = vrot.slane %v914, %v918
      %v921 = vadd.f32 %v913, %v919
      %v922 = vld [vmem:[%s262] sm:$0xff]
      %v923 = vadd.f32 %v921, %v922
      %v924 = vsel %vm906, %v923, 0.0
      %925 = vadd.xlane.f32.xlu0 %v924
      %v926 = vpop.xlane.xlu0 %925
      %v927 = vrcp.pop 32.0
      %v928 = vmul.f32 %v926, %v927
      %v929 = vsub.f32 %v923, %v928
      %v930 = vmul.f32 %v929, %v929
      %v931 = vsel %vm906, %v930, 0.0
      %932 = vadd.xlane.f32.xlu0 %v931
      %v933 = vpop.xlane.xlu0 %932
      %v934 = vmul.f32 %v933, %v927
      %v935 = vadd.f32 %v934, 1e-05
      %v936 = vrsqrt.pop %v935
      %v937 = vmul.f32 %v929, %v936
      %v938 = vld [vmem:[%s4] sm:$0x1]
      %v940 = vlaneseq
      %v941 = vshrl.u32 %v940, 7
      %v942 = vsub.s32 0, %v941
      %v943 = vrot.slane %v938, %v942
      %v945 = vmul.f32 %v937, %v943
      %v946 = vld [vmem:[%s5] sm:$0x1]
      %v948 = vlaneseq
      %v949 = vshrl.u32 %v948, 7
      %v950 = vsub.s32 0, %v949
      %v951 = vrot.slane %v946, %v950
      %v953 = vadd.f32 %v945, %v951
      %954 = vst.msk [vmem:[%s266] sm:$0xff] %vm906, %v953
      %p955 = scmp.lt.s32.totalorder %s17, 1
      %s956 = scalar_select %p955, %s17, 1
      %s957 = smul.addr %s956, 8
      %s958 = scalar_lea.vmem %s6, %s957
      // Predicated region
      $region45: #{transformer_regressor_forward.10} parent=43 // pred_check
        %p959 = pneg %p171
      $region46: #{transformer_regressor_forward.10} parent=43 // pred_check_branch
        %961 = sbr.rel (%p959) target = $region48
      $region47: #{transformer_regressor_forward.10} parent=43 // pred_region
        _
      $region48: #{transformer_regressor_forward.10} parent=43 // pred_fallthru
        _
    $region44: #{transformer_regressor_forward.10} parent=5 // pred_fallthru
      _
    %p962 = scmp.le.s32.totalorder 2, %s12
    // Predicated region
    $region49: #{transformer_regressor_forward.10} parent=5 // pred_check
      %p963 = pneg %p962
    $region50: #{transformer_regressor_forward.10} parent=5 // pred_check_branch
      %965 = sbr.rel (%p963) target = $region52
    $region51: #{transformer_regressor_forward.10} parent=5 // pred_region
      %s966 = ssub.s32 %s12, 2
      // Predicated region
      $region53: #{transformer_regressor_forward.10} parent=51 // pred_check
        %p967 = pneg %p177
      $region54: #{transformer_regressor_forward.10} parent=51 // pred_check_branch
        %969 = sbr.rel (%p967) target = $region56
      $region55: #{transformer_regressor_forward.10} parent=51 // pred_region
        %p970 = scmp.lt.s32.totalorder %s18, 1
        %s971 = scalar_select %p970, %s18, 1
        %s972 = smul.addr %s971, 8
        %s973 = scalar_lea.vmem %s6, %s972
      $region56: #{transformer_regressor_forward.10} parent=51 // pred_fallthru
        _
    $region52: #{transformer_regressor_forward.10} parent=5 // pred_fallthru
      _
  $region6: #{transformer_regressor_forward.10} parent=0 // loop_footer
    %s16 = sadd.s32 1, %s12
  $region7: #{transformer_regressor_forward.10} parent=0 // loop_footer_branch
    %11 = sbr.rel target = $region3
  $region8: #{transformer_regressor_forward.10} parent=0 // loop_exit
    _

// kernel: transformer_regressor_forward.15
$region0: #{transformer_regressor_forward.15}
  #allocation0 [shape = 'u32[]', space=smem, size = 0x4, offset = 0x4, fixed_abs, tag = 'smem constant byte address 0x4 - core index']
  #allocation1 [shape = 'u32[144,128]{1,0:T(1,128)}', space=vmem, size = 0x12000, scoped, tag = 'internal scratch']
  %s0 = inlined_call_operand.vmem [shape: f32[2,8,32], index: 0, kind: input, shape index: {}]
  %s1 = inlined_call_operand.vmem [shape: bf16[32,128], index: 1, kind: input, shape index: {}]
  %s2 = inlined_call_operand.vmem [shape: f32[1,128], index: 2, kind: input, shape index: {}]
  %s3 = inlined_call_operand.hbm [shape: f32[2,128], index: 3, kind: output, shape index: {}]
  %s4 = sld [smem:[#allocation0]]
  $region22: #{transformer_regressor_forward.15} parent=0
    _
  %s6 = ssub.s32 1, %s4
  %s7 = scalar_select 0, %s6, %s4
  $region1: #{transformer_regressor_forward.15} parent=0
    #allocation2 [shape = 'u8[1024]{0}', space=vmem, size = 0x400, scoped, tag = 'output window, operand 0, single buffered']
    #allocation3 [shape = 's32[1]{0}', space=sflag, size = 0x4, scoped, tag = 'scoped memory for transformer_regressor_forward.15']
    %8 = vsyncpa [#allocation3], 0
    // Predicated region
    $region2: #{transformer_regressor_forward.15} parent=1 // pred_check
      _
    $region3: #{transformer_regressor_forward.15} parent=1 // pred_check_branch
      %10 = sbr.rel (0) target = $region5
    $region4: #{transformer_regressor_forward.15} parent=1 // pred_region
      _
    $region5: #{transformer_regressor_forward.15} parent=1 // pred_fallthru
      _
    // Predicated region
    $region6: #{transformer_regressor_forward.15} parent=1 // pred_check
      _
    $region7: #{transformer_regressor_forward.15} parent=1 // pred_check_branch
      %12 = sbr.rel (0) target = $region9
    $region8: #{transformer_regressor_forward.15} parent=1 // pred_region
      _
    $region9: #{transformer_regressor_forward.15} parent=1 // pred_fallthru
      _
    // Predicated region
    $region10: #{transformer_regressor_forward.15} parent=1 // pred_check
      _
    $region11: #{transformer_regressor_forward.15} parent=1 // pred_check_branch
      %14 = sbr.rel (0) target = $region13
    $region12: #{transformer_regressor_forward.15} parent=1 // pred_region
      _
    $region13: #{transformer_regressor_forward.15} parent=1 // pred_fallthru
      _
    %v16 = vld [vmem:[%s0] sm:$0xff]
    %v17 = vld [vmem:[%s0 + $0x8] sm:$0xff]
    %vm18 = vcmask 261120
    %v19 = vsel %vm18, %v16, 0.0
    %v20 = vrot.slane %v19, 4
    %v21 = vadd.f32 %v19, %v20
    %v22 = vrot.slane %v21, 2
    %v23 = vadd.f32 %v21, %v22
    %v24 = vrot.slane %v23, 1
    %v25 = vadd.f32 %v23, %v24
    %v26 = vsel %vm18, %v17, 0.0
    %v27 = vrot.slane %v26, 4
    %v28 = vadd.f32 %v26, %v27
    %v29 = vrot.slane %v28, 2
    %v30 = vadd.f32 %v28, %v29
    %v31 = vrot.slane %v30, 1
    %v32 = vadd.f32 %v30, %v31
    %v33 = vrcp.pop 8.0
    %v34 = vmul.f32 %v25, %v33
    %v35 = vmul.f32 %v32, %v33
    %v36 = vpack.c.bf16 %v34, %v34
    %v37 = vpack.c.bf16 %v35, %v35
    %v38 = vld [vmem:[%s1] sm:$0xf]
    %v39 = vld [vmem:[%s1 + $0x4] sm:$0xf]
    %v40 = vld [vmem:[%s1 + $0x8] sm:$0xf]
    %v41 = vld [vmem:[%s1 + $0xc] sm:$0xf]
    %v42 = vld [vmem:[%s2] sm:$0x1]
    %v44 = vlaneseq
    %v45 = vshrl.u32 %v44, 7
    %v46 = vsub.s32 0, %v45
    %v47 = vrot.slane %v42, %v46
    %v51 = vunpack.c.l.b16 %v36
    %v52 = vunpack.c.l.b16 %v37
    %vm53 = vcmask 1041409
    %v54 = vsel %vm53, %v52, %v51
    %v55 = vpack.c.b16 %v54, %v54
    %v60 = vunpack.c.l.b16 %v38
    %v61 = vunpack.c.l.b16 %v39
    %v62 = vunpack.c.l.b16 %v40
    %v63 = vunpack.c.l.b16 %v41
    %v64 = vpack.c.b16 %v61, %v60
    %v65 = vpack.c.b16 %v63, %v62
    %v69 = vsel %vm18, %v55, 0
    %71 = vmatprep.subr.bf16.mxu0 0
    %72 = vmatpush1.bf16.msra.mxu0 %v64
    %73 = vmatprep.subr.bf16.mxu0 0
    %74 = vmatpush1.bf16.msra.mxu0 %v65
    %75 = vmatprep.subr.bf16.mxu0 0
    %76 = vmatpush1.bf16.msra.mxu0 0
    %77 = vmatprep.subr.bf16.mxu0 0
    %78 = vmatpush1.bf16.msra.mxu0 0
    %79 = vmatprep.subr.bf16.mxu0 0
    %80 = vmatpush1.bf16.msra.mxu0 0
    %81 = vmatprep.subr.bf16.mxu0 0
    %82 = vmatpush1.bf16.msra.mxu0 0
    %83 = vmatprep.subr.bf16.mxu0 0
    %84 = vmatpush1.bf16.msra.mxu0 0
    %85 = vmatprep.subr.bf16.mxu0 0
    %86 = vmatpush1.bf16.msra.mxu0 0
    %87 = vmatprep.subr.bf16.mxu0 0
    %88 = vmatpush1.bf16.msra.mxu0 0
    %89 = vmatprep.subr.bf16.mxu0 0
    %90 = vmatpush1.bf16.msra.mxu0 0
    %91 = vmatprep.subr.bf16.mxu0 0
    %92 = vmatpush1.bf16.msra.mxu0 0
    %93 = vmatprep.subr.bf16.mxu0 0
    %94 = vmatpush1.bf16.msra.mxu0 0
    %95 = vmatprep.subr.bf16.mxu0 0
    %96 = vmatpush1.bf16.msra.mxu0 0
    %97 = vmatprep.subr.bf16.mxu0 0
    %98 = vmatpush1.bf16.msra.mxu0 0
    %99 = vmatprep.subr.bf16.mxu0 0
    %100 = vmatpush1.bf16.msra.mxu0 0
    %101 = vmatprep.subr.bf16.mxu0 0
    %102 = vmatpush1.bf16.msra.mxu0 0
    %103 = vmatprep.mubr.bf16.mxu0 0
    %104 = vmatmul.mubr.bf16.gmra.mrb[0].mxu0 %v69
    %v105 = vpop.f32.mrb[0].mxu0
    %v106 = vadd.f32 %v47, %v105
    %v107 = vpop.f32.mrb[0].mxu0
    %v108 = vpop.f32.mrb[0].mxu0
    %v109 = vpop.f32.mrb[0].mxu0
    %110 = vdwg.mxu0
    %111 = vst [vmem:[#allocation2] sm:$0x3] %v106
    // Predicated region
    $region14: #{transformer_regressor_forward.15} parent=1 // pred_check
      _
    $region15: #{transformer_regressor_forward.15} parent=1 // pred_check_branch
      %113 = sbr.rel (0) target = $region17
    $region16: #{transformer_regressor_forward.15} parent=1 // pred_region
      %s115 = ssub.s32 32, 32
      %116 = vsyncadd [#allocation3], %s115
      %s118 = sshll.u32 [#allocation2], 4
      %s119 = int_to_ptr.vmem [resolvable:$true] %s118
      %121 = dma.vmem_to_hbm [thread:$0]  %s119, 32, %s3, [#allocation3]
    $region17: #{transformer_regressor_forward.15} parent=1 // pred_fallthru
      _
    // Predicated region
    $region18: #{transformer_regressor_forward.15} parent=1 // pred_check
      _
    $region19: #{transformer_regressor_forward.15} parent=1 // pred_check_branch
      %123 = sbr.rel (0) target = $region21
    $region20: #{transformer_regressor_forward.15} parent=1 // pred_region
      %124 = dma.done [#allocation3], 32
    $region21: #{transformer_regressor_forward.15} parent=1 // pred_fallthru
      _
    %125 = vsyncpa [#allocation3], 1

</llo_original>
